<compile_context>
chip_gen: v7x
topology: tpu7x:2x2x1
jax: 0.10.0
libtpu: 0.0.40
codegen_flags: <defaults>
</compile_context>

<pallas_src>
import jax
import jax.numpy as jnp
from jax.experimental import pallas as pl
from jax.experimental.pallas import tpu as pltpu


def _lstm_dense_kernel(x_ref, hc0_ref, w_ref, b_ref, out_ref, xw_ref):
    """Full LSTM recurrence + final dense head in one kernel.

    x_ref   : (T*B, I)     time-major flattened input (row = t*B + b)
    hc0_ref : (2, B, P)    [h0 ; c0], real state in lanes [0, H), rest zero
    w_ref   : (I+2P, 4P)   rows [0,I)    = W_ih^T   (gate k in lanes [kP,kP+H))
                           rows [I,I+P)  = W_hh^T   (same gate padding, rows>=H zero)
                           rows [I+P,.)  = W_dense^T (rows>=H and lanes>=I zero)
    b_ref   : (2, 4P)      row 0 = b_ih+b_hh (gate-padded), row 1 = b_dense (lanes<I)
    out_ref : (B, I+2H)    packed [ y | h_T | c_T ]
    xw_ref  : (T, B, 4P)   VMEM scratch: staged input projection, one tile per step
    """
    _, I = x_ref.shape
    T, B, G4 = xw_ref.shape
    P = G4 // 4                          # padded per-gate lane width (multiple of 128)
    H = (out_ref.shape[1] - I) // 2      # true hidden size

    wih = w_ref[0:I, :]                  # (I, 4P)
    whh = w_ref[I:I + P, :]              # (P, 4P)
    wd = w_ref[I + P:I + 2 * P, :]       # (P, 4P)

    # ---- Hoisted input projection: one well-shaped MXU call for all steps,
    #      staged into the per-step tile-aligned scratch (off the serial chain).
    xw = (jnp.dot(x_ref[...], wih, preferred_element_type=jnp.float32)
          + b_ref[0:1, :])                                  # (T*B, 4P), f32
    for t in range(T):
        xw_ref[t] = xw[t * B:(t + 1) * B, :]                # contiguous (time-major)

    h = hc0_ref[0]                                          # (B, P), lanes>=H are 0
    c = hc0_ref[1]

    # ---- Serial recurrence, fully unrolled (T static & small).  Only the
    #      recurrent matmul + lane-aligned gate math remain per step.
    for t in range(T):
        gates = xw_ref[t] + jnp.dot(h, whh,
                                    preferred_element_type=jnp.float32)  # (B, 4P)
        # Each gate is a whole 128-lane block: no sub-128-lane extracts.
        i_g = jax.nn.sigmoid(gates[:, 0 * P:1 * P])
        f_g = jax.nn.sigmoid(gates[:, 1 * P:2 * P])
        g_g = jnp.tanh(gates[:, 2 * P:3 * P])
        o_g = jax.nn.sigmoid(gates[:, 3 * P:4 * P])
        c = f_g * c + i_g * g_g
        h = o_g * jnp.tanh(c)

    # ---- Dense head on the last step: ReLU -> Dropout(eval: identity) -> Linear.
    y = (jnp.dot(jnp.maximum(h, 0.0), wd, preferred_element_type=jnp.float32)
         + b_ref[1:2, :])                                   # (B, 4P), lanes>=I are 0

    # Single packed output slab -> one store / one DMA descriptor.
    out_ref[...] = jnp.concatenate([y[:, :I], h[:, :H], c[:, :H]], axis=1)


def prepare_params(params, *, lane_pad=128):
    """One-time packing of PyTorch-shaped params into kernel-ready slabs.

    Call this once and reuse the result; it keeps the transposes, gate-lane
    padding and concatenation out of the per-forward path.
    """
    w_ih = jnp.asarray(params["w_ih"], jnp.float32)      # (4H, I)
    w_hh = jnp.asarray(params["w_hh"], jnp.float32)      # (4H, H)
    w_dn = jnp.asarray(params["w_dense"], jnp.float32)   # (I, H)
    b_lstm = (jnp.asarray(params["b_ih"], jnp.float32)
              + jnp.asarray(params["b_hh"], jnp.float32))  # (4H,)
    b_dn = jnp.asarray(params["b_dense"], jnp.float32)   # (I,)

    H = w_hh.shape[1]
    I = w_ih.shape[1]
    P = ((H + lane_pad - 1) // lane_pad) * lane_pad      # per-gate lane width

    def pad_gate_cols(m):
        # (rows, 4H) -> (rows, 4P): gate k columns [kH,(k+1)H) -> lanes [kP,kP+H)
        out = jnp.zeros((m.shape[0], 4 * P), jnp.float32)
        for k in range(4):
            out = out.at[:, k * P:k * P + H].set(m[:, k * H:(k + 1) * H])
        return out

    wih_p = pad_gate_cols(w_ih.T)                                        # (I, 4P)
    whh_p = jnp.zeros((P, 4 * P), jnp.float32).at[:H, :].set(
        pad_gate_cols(w_hh.T))                                           # (P, 4P)
    wd_p = jnp.zeros((P, 4 * P), jnp.float32).at[:H, :I].set(w_dn.T)     # (P, 4P)
    # Row offsets I and I+P are multiples of 8 -> the in-kernel row slices are
    # sublane-tile aligned (I=16, P=128 here).
    w_slab = jnp.concatenate([wih_p, whh_p, wd_p], axis=0)               # (I+2P, 4P)

    b0 = pad_gate_cols(b_lstm.reshape(1, 4 * H))                         # (1, 4P)
    b1 = jnp.zeros((1, 4 * P), jnp.float32).at[0, :I].set(b_dn)          # (1, 4P)
    bias_slab = jnp.concatenate([b0, b1], axis=0)                        # (2, 4P)

    return {"w_slab": w_slab, "bias_slab": bias_slab}


@jax.jit
def autoregressive_lstm_forward(x, hidden, prepared):
    """Mirrors AutoregressiveLSTM.forward (eval mode).

    x        : (B, T, I)  float32, batch_first
    hidden   : (h0, c0), each (1, B, H)
    prepared : output of prepare_params(params)
    Returns (y, (h_n, c_n)) with y (B, 1, I) and h_n/c_n (1, B, H).
    """
    w_slab = prepared["w_slab"]
    bias_slab = prepared["bias_slab"]
    h0, c0 = hidden

    B, T, I = x.shape
    H = h0.shape[-1]
    G4 = w_slab.shape[1]
    P = G4 // 4

    # Time-major lane-dense slab: step t's gate rows are the contiguous pair
    # [t*B, (t+1)*B) (free transpose of a tiny array in the wrapper).
    x2d = jnp.transpose(x, (1, 0, 2)).reshape(T * B, I).astype(jnp.float32)

    # Initial state zero-padded to the per-gate lane width P.
    hc0 = jnp.zeros((2, B, P), jnp.float32)
    hc0 = hc0.at[0, :, :H].set(h0[0]).at[1, :, :H].set(c0[0])

    cost = pl.CostEstimate(
        flops=2 * T * B * I * G4 + 2 * T * B * P * G4 + 2 * B * P * G4
              + 12 * T * B * G4,
        transcendentals=5 * T * B * P,
        bytes_accessed=4 * (x2d.size + hc0.size + w_slab.size + bias_slab.size
                            + B * (I + 2 * H)))

    vmem = pl.BlockSpec(memory_space=pltpu.MemorySpace.VMEM)
    out = pl.pallas_call(
        _lstm_dense_kernel,
        out_shape=jax.ShapeDtypeStruct((B, I + 2 * H), jnp.float32),
        in_specs=[vmem, vmem, vmem, vmem],
        out_specs=vmem,
        scratch_shapes=[pltpu.VMEM((T, B, G4), jnp.float32)],
        # 32 MiB is ample here and stays under the ~48-56 MiB cap appropriate
        # for v7x (64 MiB physical VMEM); v5e/v6e could go much higher.
        compiler_params=pltpu.CompilerParams(vmem_limit_bytes=32 * 1024 * 1024),
        cost_estimate=cost,
    )(x2d, hc0, w_slab, bias_slab)

    y = out[:, :I]
    h_n = out[:, I:I + H]
    c_n = out[:, I + H:I + 2 * H]
    return y[:, None, :], (h_n[None], c_n[None])


def _init_params(key, input_size, hidden_size):
    """Deterministic init mimicking PyTorch's U(-1/sqrt(H), 1/sqrt(H))."""
    bound = 1.0 / jnp.sqrt(jnp.float32(hidden_size))
    ks = jax.random.split(key, 6)
    u = lambda k, shape: jax.random.uniform(k, shape, jnp.float32, -bound, bound)
    return {
        "w_ih": u(ks[0], (4 * hidden_size, input_size)),
        "w_hh": u(ks[1], (4 * hidden_size, hidden_size)),
        "b_ih": u(ks[2], (4 * hidden_size,)),
        "b_hh": u(ks[3], (4 * hidden_size,)),
        "w_dense": u(ks[4], (input_size, hidden_size)),
        "b_dense": u(ks[5], (input_size,)),
    }


def _reference_forward(x, hidden, params):
    """Pure-JAX reference of the same forward pass (for sanity checking)."""
    h, c = hidden[0][0], hidden[1][0]
    H = h.shape[-1]
    wih_t = params["w_ih"].T
    whh_t = params["w_hh"].T
    bias = params["b_ih"] + params["b_hh"]
    for t in range(x.shape[1]):
        gates = x[:, t, :] @ wih_t + h @ whh_t + bias
        i_g = jax.nn.sigmoid(gates[:, 0 * H:1 * H])
        f_g = jax.nn.sigmoid(gates[:, 1 * H:2 * H])
        g_g = jnp.tanh(gates[:, 2 * H:3 * H])
        o_g = jax.nn.sigmoid(gates[:, 3 * H:4 * H])
        c = f_g * c + i_g * g_g
        h = o_g * jnp.tanh(c)
    y = jnp.maximum(h, 0.0) @ params["w_dense"].T + params["b_dense"]
    return y[:, None, :], (h[None], c[None])


if __name__ == "__main__":
    B, T, I, H = 2, 8, 16, 32

    key = jax.random.PRNGKey(0)
    k_x, k_p = jax.random.split(key)

    x = jax.random.normal(k_x, (B, T, I), jnp.float32)
    params = _init_params(k_p, I, H)
    # init_hidden(batch_size=B): zeros of shape (n_layers, B, H)
    hidden = (jnp.zeros((1, B, H), jnp.float32), jnp.zeros((1, B, H), jnp.float32))

    prepared = prepare_params(params)          # one-time weight packing
    jax.block_until_ready(prepared)

    y, (h_n, c_n) = autoregressive_lstm_forward(x, hidden, prepared)
    jax.block_until_ready((y, h_n, c_n))

    y_ref, (h_ref, c_ref) = _reference_forward(x, hidden, params)
    assert y.shape == (B, 1, I) and h_n.shape == (1, B, H) and c_n.shape == (1, B, H)
    assert jnp.allclose(y, y_ref, atol=1e-5, rtol=1e-5)
    assert jnp.allclose(h_n, h_ref, atol=1e-5, rtol=1e-5)
    assert jnp.allclose(c_n, c_ref, atol=1e-5, rtol=1e-5)

    print("KERNEL_OK")
</pallas_src>

<mosaic_0001>
module attributes {stable_mosaic.version = 11 : i64} {
  func.func @_lstm_dense_kernel(%arg0: memref<16x16xf32, #tpu.memory_space<vmem>>, %arg1: memref<2x2x128xf32, #tpu.memory_space<vmem>>, %arg2: memref<272x512xf32, #tpu.memory_space<vmem>>, %arg3: memref<2x512xf32, #tpu.memory_space<vmem>>, %arg4: memref<2x80xf32, #tpu.memory_space<vmem>>, %arg5: memref<8x2x512xf32, #tpu.memory_space<vmem>>) attributes {dimension_semantics = [], scalar_prefetch = 0 : i64, scratch_operands = 1 : i64, tpu.core_type = #tpu.core_type<tc>} {
    %c0 = arith.constant 0 : index
    %c0_0 = arith.constant 0 : index
    %0 = vector.load %arg2[%c0, %c0_0] : memref<272x512xf32, #tpu.memory_space<vmem>>, vector<16x512xf32>
    %c16 = arith.constant 16 : index
    %c0_1 = arith.constant 0 : index
    %1 = vector.load %arg2[%c16, %c0_1] : memref<272x512xf32, #tpu.memory_space<vmem>>, vector<128x512xf32>
    %c144 = arith.constant 144 : index
    %c0_2 = arith.constant 0 : index
    %2 = vector.load %arg2[%c144, %c0_2] : memref<272x512xf32, #tpu.memory_space<vmem>>, vector<128x512xf32>
    %c0_3 = arith.constant 0 : index
    %c0_4 = arith.constant 0 : index
    %3 = vector.load %arg0[%c0_3, %c0_4] : memref<16x16xf32, #tpu.memory_space<vmem>>, vector<16x16xf32>
    %cst = arith.constant dense<0.000000e+00> : vector<16x512xf32>
    %4 = tpu.matmul %3, %0, %cst {dimension_numbers = #tpu.dot_dimension_numbers<[1], [0], [0], [1], [0, 0, 1, 1], [], []>} : vector<16x16xf32>, vector<16x512xf32>, vector<16x512xf32> -> vector<16x512xf32>
    %c0_5 = arith.constant 0 : index
    %c0_6 = arith.constant 0 : index
    %5 = vector.load %arg3[%c0_5, %c0_6] : memref<2x512xf32, #tpu.memory_space<vmem>>, vector<1x512xf32>
    %6 = vector.broadcast %5 : vector<1x512xf32> to vector<16x512xf32>
    %7 = arith.addf %4, %6 : vector<16x512xf32>
    %8 = vector.extract_strided_slice %7 {offsets = [0, 0], sizes = [2, 512], strides = [1, 1]} : vector<16x512xf32> to vector<2x512xf32>
    %c0_7 = arith.constant 0 : index
    %c0_8 = arith.constant 0 : index
    %c0_9 = arith.constant 0 : index
    %9 = vector.load %arg5[%c0_7, %c0_8, %c0_9] : memref<8x2x512xf32, #tpu.memory_space<vmem>>, vector<1x2x512xf32>
    %10 = vector.shape_cast %9 : vector<1x2x512xf32> to vector<2x512xf32>
    %11 = vector.shape_cast %8 : vector<2x512xf32> to vector<1x2x512xf32>
    tpu.vector_store %arg5[%c0_7, %c0_8, %c0_9], %11 {strides = array<i32>} : memref<8x2x512xf32, #tpu.memory_space<vmem>>, vector<1x2x512xf32>,
    %12 = vector.extract_strided_slice %7 {offsets = [2, 0], sizes = [2, 512], strides = [1, 1]} : vector<16x512xf32> to vector<2x512xf32>
    %c1 = arith.constant 1 : index
    %c0_10 = arith.constant 0 : index
    %c0_11 = arith.constant 0 : index
    %13 = vector.load %arg5[%c1, %c0_10, %c0_11] : memref<8x2x512xf32, #tpu.memory_space<vmem>>, vector<1x2x512xf32>
    %14 = vector.shape_cast %13 : vector<1x2x512xf32> to vector<2x512xf32>
    %15 = vector.shape_cast %12 : vector<2x512xf32> to vector<1x2x512xf32>
    tpu.vector_store %arg5[%c1, %c0_10, %c0_11], %15 {strides = array<i32>} : memref<8x2x512xf32, #tpu.memory_space<vmem>>, vector<1x2x512xf32>,
    %16 = vector.extract_strided_slice %7 {offsets = [4, 0], sizes = [2, 512], strides = [1, 1]} : vector<16x512xf32> to vector<2x512xf32>
    %c2 = arith.constant 2 : index
    %c0_12 = arith.constant 0 : index
    %c0_13 = arith.constant 0 : index
    %17 = vector.load %arg5[%c2, %c0_12, %c0_13] : memref<8x2x512xf32, #tpu.memory_space<vmem>>, vector<1x2x512xf32>
    %18 = vector.shape_cast %17 : vector<1x2x512xf32> to vector<2x512xf32>
    %19 = vector.shape_cast %16 : vector<2x512xf32> to vector<1x2x512xf32>
    tpu.vector_store %arg5[%c2, %c0_12, %c0_13], %19 {strides = array<i32>} : memref<8x2x512xf32, #tpu.memory_space<vmem>>, vector<1x2x512xf32>,
    %20 = vector.extract_strided_slice %7 {offsets = [6, 0], sizes = [2, 512], strides = [1, 1]} : vector<16x512xf32> to vector<2x512xf32>
    %c3 = arith.constant 3 : index
    %c0_14 = arith.constant 0 : index
    %c0_15 = arith.constant 0 : index
    %21 = vector.load %arg5[%c3, %c0_14, %c0_15] : memref<8x2x512xf32, #tpu.memory_space<vmem>>, vector<1x2x512xf32>
    %22 = vector.shape_cast %21 : vector<1x2x512xf32> to vector<2x512xf32>
    %23 = vector.shape_cast %20 : vector<2x512xf32> to vector<1x2x512xf32>
    tpu.vector_store %arg5[%c3, %c0_14, %c0_15], %23 {strides = array<i32>} : memref<8x2x512xf32, #tpu.memory_space<vmem>>, vector<1x2x512xf32>,
    %24 = vector.extract_strided_slice %7 {offsets = [8, 0], sizes = [2, 512], strides = [1, 1]} : vector<16x512xf32> to vector<2x512xf32>
    %c4 = arith.constant 4 : index
    %c0_16 = arith.constant 0 : index
    %c0_17 = arith.constant 0 : index
    %25 = vector.load %arg5[%c4, %c0_16, %c0_17] : memref<8x2x512xf32, #tpu.memory_space<vmem>>, vector<1x2x512xf32>
    %26 = vector.shape_cast %25 : vector<1x2x512xf32> to vector<2x512xf32>
    %27 = vector.shape_cast %24 : vector<2x512xf32> to vector<1x2x512xf32>
    tpu.vector_store %arg5[%c4, %c0_16, %c0_17], %27 {strides = array<i32>} : memref<8x2x512xf32, #tpu.memory_space<vmem>>, vector<1x2x512xf32>,
    %28 = vector.extract_strided_slice %7 {offsets = [10, 0], sizes = [2, 512], strides = [1, 1]} : vector<16x512xf32> to vector<2x512xf32>
    %c5 = arith.constant 5 : index
    %c0_18 = arith.constant 0 : index
    %c0_19 = arith.constant 0 : index
    %29 = vector.load %arg5[%c5, %c0_18, %c0_19] : memref<8x2x512xf32, #tpu.memory_space<vmem>>, vector<1x2x512xf32>
    %30 = vector.shape_cast %29 : vector<1x2x512xf32> to vector<2x512xf32>
    %31 = vector.shape_cast %28 : vector<2x512xf32> to vector<1x2x512xf32>
    tpu.vector_store %arg5[%c5, %c0_18, %c0_19], %31 {strides = array<i32>} : memref<8x2x512xf32, #tpu.memory_space<vmem>>, vector<1x2x512xf32>,
    %32 = vector.extract_strided_slice %7 {offsets = [12, 0], sizes = [2, 512], strides = [1, 1]} : vector<16x512xf32> to vector<2x512xf32>
    %c6 = arith.constant 6 : index
    %c0_20 = arith.constant 0 : index
    %c0_21 = arith.constant 0 : index
    %33 = vector.load %arg5[%c6, %c0_20, %c0_21] : memref<8x2x512xf32, #tpu.memory_space<vmem>>, vector<1x2x512xf32>
    %34 = vector.shape_cast %33 : vector<1x2x512xf32> to vector<2x512xf32>
    %35 = vector.shape_cast %32 : vector<2x512xf32> to vector<1x2x512xf32>
    tpu.vector_store %arg5[%c6, %c0_20, %c0_21], %35 {strides = array<i32>} : memref<8x2x512xf32, #tpu.memory_space<vmem>>, vector<1x2x512xf32>,
    %36 = vector.extract_strided_slice %7 {offsets = [14, 0], sizes = [2, 512], strides = [1, 1]} : vector<16x512xf32> to vector<2x512xf32>
    %c7 = arith.constant 7 : index
    %c0_22 = arith.constant 0 : index
    %c0_23 = arith.constant 0 : index
    %37 = vector.load %arg5[%c7, %c0_22, %c0_23] : memref<8x2x512xf32, #tpu.memory_space<vmem>>, vector<1x2x512xf32>
    %38 = vector.shape_cast %37 : vector<1x2x512xf32> to vector<2x512xf32>
    %39 = vector.shape_cast %36 : vector<2x512xf32> to vector<1x2x512xf32>
    tpu.vector_store %arg5[%c7, %c0_22, %c0_23], %39 {strides = array<i32>} : memref<8x2x512xf32, #tpu.memory_space<vmem>>, vector<1x2x512xf32>,
    %c0_24 = arith.constant 0 : index
    %c0_25 = arith.constant 0 : index
    %c0_26 = arith.constant 0 : index
    %40 = vector.load %arg1[%c0_24, %c0_25, %c0_26] : memref<2x2x128xf32, #tpu.memory_space<vmem>>, vector<1x2x128xf32>
    %41 = vector.shape_cast %40 : vector<1x2x128xf32> to vector<2x128xf32>
    %c1_27 = arith.constant 1 : index
    %c0_28 = arith.constant 0 : index
    %c0_29 = arith.constant 0 : index
    %42 = vector.load %arg1[%c1_27, %c0_28, %c0_29] : memref<2x2x128xf32, #tpu.memory_space<vmem>>, vector<1x2x128xf32>
    %43 = vector.shape_cast %42 : vector<1x2x128xf32> to vector<2x128xf32>
    %c0_30 = arith.constant 0 : index
    %c0_31 = arith.constant 0 : index
    %c0_32 = arith.constant 0 : index
    %44 = vector.load %arg5[%c0_30, %c0_31, %c0_32] : memref<8x2x512xf32, #tpu.memory_space<vmem>>, vector<1x2x512xf32>
    %45 = vector.shape_cast %44 : vector<1x2x512xf32> to vector<2x512xf32>
    %cst_33 = arith.constant dense<0.000000e+00> : vector<2x512xf32>
    %46 = tpu.matmul %41, %1, %cst_33 {dimension_numbers = #tpu.dot_dimension_numbers<[1], [0], [0], [1], [0, 0, 1, 1], [], []>} : vector<2x128xf32>, vector<128x512xf32>, vector<2x512xf32> -> vector<2x512xf32>
    %47 = arith.addf %45, %46 : vector<2x512xf32>
    %48 = vector.extract_strided_slice %47 {offsets = [0, 0], sizes = [2, 128], strides = [1, 1]} : vector<2x512xf32> to vector<2x128xf32>
    %49 = arith.negf %48 : vector<2x128xf32>
    %50 = math.exp %49 : vector<2x128xf32>
    %cst_34 = arith.constant 1.000000e+00 : f32
    %51 = vector.broadcast %cst_34 : f32 to vector<2x128xf32>
    %52 = arith.addf %51, %50 : vector<2x128xf32>
    %53 = arith.divf %51, %52 : vector<2x128xf32>
    %54 = vector.extract_strided_slice %47 {offsets = [0, 128], sizes = [2, 128], strides = [1, 1]} : vector<2x512xf32> to vector<2x128xf32>
    %55 = arith.negf %54 : vector<2x128xf32>
    %56 = math.exp %55 : vector<2x128xf32>
    %cst_35 = arith.constant 1.000000e+00 : f32
    %57 = vector.broadcast %cst_35 : f32 to vector<2x128xf32>
    %58 = arith.addf %57, %56 : vector<2x128xf32>
    %59 = arith.divf %57, %58 : vector<2x128xf32>
    %60 = vector.extract_strided_slice %47 {offsets = [0, 256], sizes = [2, 128], strides = [1, 1]} : vector<2x512xf32> to vector<2x128xf32>
    %61 = math.tanh %60 : vector<2x128xf32>
    %62 = vector.extract_strided_slice %47 {offsets = [0, 384], sizes = [2, 128], strides = [1, 1]} : vector<2x512xf32> to vector<2x128xf32>
    %63 = arith.negf %62 : vector<2x128xf32>
    %64 = math.exp %63 : vector<2x128xf32>
    %cst_36 = arith.constant 1.000000e+00 : f32
    %65 = vector.broadcast %cst_36 : f32 to vector<2x128xf32>
    %66 = arith.addf %65, %64 : vector<2x128xf32>
    %67 = arith.divf %65, %66 : vector<2x128xf32>
    %68 = arith.mulf %59, %43 : vector<2x128xf32>
    %69 = arith.mulf %53, %61 : vector<2x128xf32>
    %70 = arith.addf %68, %69 : vector<2x128xf32>
    %71 = math.tanh %70 : vector<2x128xf32>
    %72 = arith.mulf %67, %71 : vector<2x128xf32>
    %c1_37 = arith.constant 1 : index
    %c0_38 = arith.constant 0 : index
    %c0_39 = arith.constant 0 : index
    %73 = vector.load %arg5[%c1_37, %c0_38, %c0_39] : memref<8x2x512xf32, #tpu.memory_space<vmem>>, vector<1x2x512xf32>
    %74 = vector.shape_cast %73 : vector<1x2x512xf32> to vector<2x512xf32>
    %cst_40 = arith.constant dense<0.000000e+00> : vector<2x512xf32>
    %75 = tpu.matmul %72, %1, %cst_40 {dimension_numbers = #tpu.dot_dimension_numbers<[1], [0], [0], [1], [0, 0, 1, 1], [], []>} : vector<2x128xf32>, vector<128x512xf32>, vector<2x512xf32> -> vector<2x512xf32>
    %76 = arith.addf %74, %75 : vector<2x512xf32>
    %77 = vector.extract_strided_slice %76 {offsets = [0, 0], sizes = [2, 128], strides = [1, 1]} : vector<2x512xf32> to vector<2x128xf32>
    %78 = arith.negf %77 : vector<2x128xf32>
    %79 = math.exp %78 : vector<2x128xf32>
    %cst_41 = arith.constant 1.000000e+00 : f32
    %80 = vector.broadcast %cst_41 : f32 to vector<2x128xf32>
    %81 = arith.addf %80, %79 : vector<2x128xf32>
    %82 = arith.divf %80, %81 : vector<2x128xf32>
    %83 = vector.extract_strided_slice %76 {offsets = [0, 128], sizes = [2, 128], strides = [1, 1]} : vector<2x512xf32> to vector<2x128xf32>
    %84 = arith.negf %83 : vector<2x128xf32>
    %85 = math.exp %84 : vector<2x128xf32>
    %cst_42 = arith.constant 1.000000e+00 : f32
    %86 = vector.broadcast %cst_42 : f32 to vector<2x128xf32>
    %87 = arith.addf %86, %85 : vector<2x128xf32>
    %88 = arith.divf %86, %87 : vector<2x128xf32>
    %89 = vector.extract_strided_slice %76 {offsets = [0, 256], sizes = [2, 128], strides = [1, 1]} : vector<2x512xf32> to vector<2x128xf32>
    %90 = math.tanh %89 : vector<2x128xf32>
    %91 = vector.extract_strided_slice %76 {offsets = [0, 384], sizes = [2, 128], strides = [1, 1]} : vector<2x512xf32> to vector<2x128xf32>
    %92 = arith.negf %91 : vector<2x128xf32>
    %93 = math.exp %92 : vector<2x128xf32>
    %cst_43 = arith.constant 1.000000e+00 : f32
    %94 = vector.broadcast %cst_43 : f32 to vector<2x128xf32>
    %95 = arith.addf %94, %93 : vector<2x128xf32>
    %96 = arith.divf %94, %95 : vector<2x128xf32>
    %97 = arith.mulf %88, %70 : vector<2x128xf32>
    %98 = arith.mulf %82, %90 : vector<2x128xf32>
    %99 = arith.addf %97, %98 : vector<2x128xf32>
    %100 = math.tanh %99 : vector<2x128xf32>
    %101 = arith.mulf %96, %100 : vector<2x128xf32>
    %c2_44 = arith.constant 2 : index
    %c0_45 = arith.constant 0 : index
    %c0_46 = arith.constant 0 : index
    %102 = vector.load %arg5[%c2_44, %c0_45, %c0_46] : memref<8x2x512xf32, #tpu.memory_space<vmem>>, vector<1x2x512xf32>
    %103 = vector.shape_cast %102 : vector<1x2x512xf32> to vector<2x512xf32>
    %cst_47 = arith.constant dense<0.000000e+00> : vector<2x512xf32>
    %104 = tpu.matmul %101, %1, %cst_47 {dimension_numbers = #tpu.dot_dimension_numbers<[1], [0], [0], [1], [0, 0, 1, 1], [], []>} : vector<2x128xf32>, vector<128x512xf32>, vector<2x512xf32> -> vector<2x512xf32>
    %105 = arith.addf %103, %104 : vector<2x512xf32>
    %106 = vector.extract_strided_slice %105 {offsets = [0, 0], sizes = [2, 128], strides = [1, 1]} : vector<2x512xf32> to vector<2x128xf32>
    %107 = arith.negf %106 : vector<2x128xf32>
    %108 = math.exp %107 : vector<2x128xf32>
    %cst_48 = arith.constant 1.000000e+00 : f32
    %109 = vector.broadcast %cst_48 : f32 to vector<2x128xf32>
    %110 = arith.addf %109, %108 : vector<2x128xf32>
    %111 = arith.divf %109, %110 : vector<2x128xf32>
    %112 = vector.extract_strided_slice %105 {offsets = [0, 128], sizes = [2, 128], strides = [1, 1]} : vector<2x512xf32> to vector<2x128xf32>
    %113 = arith.negf %112 : vector<2x128xf32>
    %114 = math.exp %113 : vector<2x128xf32>
    %cst_49 = arith.constant 1.000000e+00 : f32
    %115 = vector.broadcast %cst_49 : f32 to vector<2x128xf32>
    %116 = arith.addf %115, %114 : vector<2x128xf32>
    %117 = arith.divf %115, %116 : vector<2x128xf32>
    %118 = vector.extract_strided_slice %105 {offsets = [0, 256], sizes = [2, 128], strides = [1, 1]} : vector<2x512xf32> to vector<2x128xf32>
    %119 = math.tanh %118 : vector<2x128xf32>
    %120 = vector.extract_strided_slice %105 {offsets = [0, 384], sizes = [2, 128], strides = [1, 1]} : vector<2x512xf32> to vector<2x128xf32>
    %121 = arith.negf %120 : vector<2x128xf32>
    %122 = math.exp %121 : vector<2x128xf32>
    %cst_50 = arith.constant 1.000000e+00 : f32
    %123 = vector.broadcast %cst_50 : f32 to vector<2x128xf32>
    %124 = arith.addf %123, %122 : vector<2x128xf32>
    %125 = arith.divf %123, %124 : vector<2x128xf32>
    %126 = arith.mulf %117, %99 : vector<2x128xf32>
    %127 = arith.mulf %111, %119 : vector<2x128xf32>
    %128 = arith.addf %126, %127 : vector<2x128xf32>
    %129 = math.tanh %128 : vector<2x128xf32>
    %130 = arith.mulf %125, %129 : vector<2x128xf32>
    %c3_51 = arith.constant 3 : index
    %c0_52 = arith.constant 0 : index
    %c0_53 = arith.constant 0 : index
    %131 = vector.load %arg5[%c3_51, %c0_52, %c0_53] : memref<8x2x512xf32, #tpu.memory_space<vmem>>, vector<1x2x512xf32>
    %132 = vector.shape_cast %131 : vector<1x2x512xf32> to vector<2x512xf32>
    %cst_54 = arith.constant dense<0.000000e+00> : vector<2x512xf32>
    %133 = tpu.matmul %130, %1, %cst_54 {dimension_numbers = #tpu.dot_dimension_numbers<[1], [0], [0], [1], [0, 0, 1, 1], [], []>} : vector<2x128xf32>, vector<128x512xf32>, vector<2x512xf32> -> vector<2x512xf32>
    %134 = arith.addf %132, %133 : vector<2x512xf32>
    %135 = vector.extract_strided_slice %134 {offsets = [0, 0], sizes = [2, 128], strides = [1, 1]} : vector<2x512xf32> to vector<2x128xf32>
    %136 = arith.negf %135 : vector<2x128xf32>
    %137 = math.exp %136 : vector<2x128xf32>
    %cst_55 = arith.constant 1.000000e+00 : f32
    %138 = vector.broadcast %cst_55 : f32 to vector<2x128xf32>
    %139 = arith.addf %138, %137 : vector<2x128xf32>
    %140 = arith.divf %138, %139 : vector<2x128xf32>
    %141 = vector.extract_strided_slice %134 {offsets = [0, 128], sizes = [2, 128], strides = [1, 1]} : vector<2x512xf32> to vector<2x128xf32>
    %142 = arith.negf %141 : vector<2x128xf32>
    %143 = math.exp %142 : vector<2x128xf32>
    %cst_56 = arith.constant 1.000000e+00 : f32
    %144 = vector.broadcast %cst_56 : f32 to vector<2x128xf32>
    %145 = arith.addf %144, %143 : vector<2x128xf32>
    %146 = arith.divf %144, %145 : vector<2x128xf32>
    %147 = vector.extract_strided_slice %134 {offsets = [0, 256], sizes = [2, 128], strides = [1, 1]} : vector<2x512xf32> to vector<2x128xf32>
    %148 = math.tanh %147 : vector<2x128xf32>
    %149 = vector.extract_strided_slice %134 {offsets = [0, 384], sizes = [2, 128], strides = [1, 1]} : vector<2x512xf32> to vector<2x128xf32>
    %150 = arith.negf %149 : vector<2x128xf32>
    %151 = math.exp %150 : vector<2x128xf32>
    %cst_57 = arith.constant 1.000000e+00 : f32
    %152 = vector.broadcast %cst_57 : f32 to vector<2x128xf32>
    %153 = arith.addf %152, %151 : vector<2x128xf32>
    %154 = arith.divf %152, %153 : vector<2x128xf32>
    %155 = arith.mulf %146, %128 : vector<2x128xf32>
    %156 = arith.mulf %140, %148 : vector<2x128xf32>
    %157 = arith.addf %155, %156 : vector<2x128xf32>
    %158 = math.tanh %157 : vector<2x128xf32>
    %159 = arith.mulf %154, %158 : vector<2x128xf32>
    %c4_58 = arith.constant 4 : index
    %c0_59 = arith.constant 0 : index
    %c0_60 = arith.constant 0 : index
    %160 = vector.load %arg5[%c4_58, %c0_59, %c0_60] : memref<8x2x512xf32, #tpu.memory_space<vmem>>, vector<1x2x512xf32>
    %161 = vector.shape_cast %160 : vector<1x2x512xf32> to vector<2x512xf32>
    %cst_61 = arith.constant dense<0.000000e+00> : vector<2x512xf32>
    %162 = tpu.matmul %159, %1, %cst_61 {dimension_numbers = #tpu.dot_dimension_numbers<[1], [0], [0], [1], [0, 0, 1, 1], [], []>} : vector<2x128xf32>, vector<128x512xf32>, vector<2x512xf32> -> vector<2x512xf32>
    %163 = arith.addf %161, %162 : vector<2x512xf32>
    %164 = vector.extract_strided_slice %163 {offsets = [0, 0], sizes = [2, 128], strides = [1, 1]} : vector<2x512xf32> to vector<2x128xf32>
    %165 = arith.negf %164 : vector<2x128xf32>
    %166 = math.exp %165 : vector<2x128xf32>
    %cst_62 = arith.constant 1.000000e+00 : f32
    %167 = vector.broadcast %cst_62 : f32 to vector<2x128xf32>
    %168 = arith.addf %167, %166 : vector<2x128xf32>
    %169 = arith.divf %167, %168 : vector<2x128xf32>
    %170 = vector.extract_strided_slice %163 {offsets = [0, 128], sizes = [2, 128], strides = [1, 1]} : vector<2x512xf32> to vector<2x128xf32>
    %171 = arith.negf %170 : vector<2x128xf32>
    %172 = math.exp %171 : vector<2x128xf32>
    %cst_63 = arith.constant 1.000000e+00 : f32
    %173 = vector.broadcast %cst_63 : f32 to vector<2x128xf32>
    %174 = arith.addf %173, %172 : vector<2x128xf32>
    %175 = arith.divf %173, %174 : vector<2x128xf32>
    %176 = vector.extract_strided_slice %163 {offsets = [0, 256], sizes = [2, 128], strides = [1, 1]} : vector<2x512xf32> to vector<2x128xf32>
    %177 = math.tanh %176 : vector<2x128xf32>
    %178 = vector.extract_strided_slice %163 {offsets = [0, 384], sizes = [2, 128], strides = [1, 1]} : vector<2x512xf32> to vector<2x128xf32>
    %179 = arith.negf %178 : vector<2x128xf32>
    %180 = math.exp %179 : vector<2x128xf32>
    %cst_64 = arith.constant 1.000000e+00 : f32
    %181 = vector.broadcast %cst_64 : f32 to vector<2x128xf32>
    %182 = arith.addf %181, %180 : vector<2x128xf32>
    %183 = arith.divf %181, %182 : vector<2x128xf32>
    %184 = arith.mulf %175, %157 : vector<2x128xf32>
    %185 = arith.mulf %169, %177 : vector<2x128xf32>
    %186 = arith.addf %184, %185 : vector<2x128xf32>
    %187 = math.tanh %186 : vector<2x128xf32>
    %188 = arith.mulf %183, %187 : vector<2x128xf32>
    %c5_65 = arith.constant 5 : index
    %c0_66 = arith.constant 0 : index
    %c0_67 = arith.constant 0 : index
    %189 = vector.load %arg5[%c5_65, %c0_66, %c0_67] : memref<8x2x512xf32, #tpu.memory_space<vmem>>, vector<1x2x512xf32>
    %190 = vector.shape_cast %189 : vector<1x2x512xf32> to vector<2x512xf32>
    %cst_68 = arith.constant dense<0.000000e+00> : vector<2x512xf32>
    %191 = tpu.matmul %188, %1, %cst_68 {dimension_numbers = #tpu.dot_dimension_numbers<[1], [0], [0], [1], [0, 0, 1, 1], [], []>} : vector<2x128xf32>, vector<128x512xf32>, vector<2x512xf32> -> vector<2x512xf32>
    %192 = arith.addf %190, %191 : vector<2x512xf32>
    %193 = vector.extract_strided_slice %192 {offsets = [0, 0], sizes = [2, 128], strides = [1, 1]} : vector<2x512xf32> to vector<2x128xf32>
    %194 = arith.negf %193 : vector<2x128xf32>
    %195 = math.exp %194 : vector<2x128xf32>
    %cst_69 = arith.constant 1.000000e+00 : f32
    %196 = vector.broadcast %cst_69 : f32 to vector<2x128xf32>
    %197 = arith.addf %196, %195 : vector<2x128xf32>
    %198 = arith.divf %196, %197 : vector<2x128xf32>
    %199 = vector.extract_strided_slice %192 {offsets = [0, 128], sizes = [2, 128], strides = [1, 1]} : vector<2x512xf32> to vector<2x128xf32>
    %200 = arith.negf %199 : vector<2x128xf32>
    %201 = math.exp %200 : vector<2x128xf32>
    %cst_70 = arith.constant 1.000000e+00 : f32
    %202 = vector.broadcast %cst_70 : f32 to vector<2x128xf32>
    %203 = arith.addf %202, %201 : vector<2x128xf32>
    %204 = arith.divf %202, %203 : vector<2x128xf32>
    %205 = vector.extract_strided_slice %192 {offsets = [0, 256], sizes = [2, 128], strides = [1, 1]} : vector<2x512xf32> to vector<2x128xf32>
    %206 = math.tanh %205 : vector<2x128xf32>
    %207 = vector.extract_strided_slice %192 {offsets = [0, 384], sizes = [2, 128], strides = [1, 1]} : vector<2x512xf32> to vector<2x128xf32>
    %208 = arith.negf %207 : vector<2x128xf32>
    %209 = math.exp %208 : vector<2x128xf32>
    %cst_71 = arith.constant 1.000000e+00 : f32
    %210 = vector.broadcast %cst_71 : f32 to vector<2x128xf32>
    %211 = arith.addf %210, %209 : vector<2x128xf32>
    %212 = arith.divf %210, %211 : vector<2x128xf32>
    %213 = arith.mulf %204, %186 : vector<2x128xf32>
    %214 = arith.mulf %198, %206 : vector<2x128xf32>
    %215 = arith.addf %213, %214 : vector<2x128xf32>
    %216 = math.tanh %215 : vector<2x128xf32>
    %217 = arith.mulf %212, %216 : vector<2x128xf32>
    %c6_72 = arith.constant 6 : index
    %c0_73 = arith.constant 0 : index
    %c0_74 = arith.constant 0 : index
    %218 = vector.load %arg5[%c6_72, %c0_73, %c0_74] : memref<8x2x512xf32, #tpu.memory_space<vmem>>, vector<1x2x512xf32>
    %219 = vector.shape_cast %218 : vector<1x2x512xf32> to vector<2x512xf32>
    %cst_75 = arith.constant dense<0.000000e+00> : vector<2x512xf32>
    %220 = tpu.matmul %217, %1, %cst_75 {dimension_numbers = #tpu.dot_dimension_numbers<[1], [0], [0], [1], [0, 0, 1, 1], [], []>} : vector<2x128xf32>, vector<128x512xf32>, vector<2x512xf32> -> vector<2x512xf32>
    %221 = arith.addf %219, %220 : vector<2x512xf32>
    %222 = vector.extract_strided_slice %221 {offsets = [0, 0], sizes = [2, 128], strides = [1, 1]} : vector<2x512xf32> to vector<2x128xf32>
    %223 = arith.negf %222 : vector<2x128xf32>
    %224 = math.exp %223 : vector<2x128xf32>
    %cst_76 = arith.constant 1.000000e+00 : f32
    %225 = vector.broadcast %cst_76 : f32 to vector<2x128xf32>
    %226 = arith.addf %225, %224 : vector<2x128xf32>
    %227 = arith.divf %225, %226 : vector<2x128xf32>
    %228 = vector.extract_strided_slice %221 {offsets = [0, 128], sizes = [2, 128], strides = [1, 1]} : vector<2x512xf32> to vector<2x128xf32>
    %229 = arith.negf %228 : vector<2x128xf32>
    %230 = math.exp %229 : vector<2x128xf32>
    %cst_77 = arith.constant 1.000000e+00 : f32
    %231 = vector.broadcast %cst_77 : f32 to vector<2x128xf32>
    %232 = arith.addf %231, %230 : vector<2x128xf32>
    %233 = arith.divf %231, %232 : vector<2x128xf32>
    %234 = vector.extract_strided_slice %221 {offsets = [0, 256], sizes = [2, 128], strides = [1, 1]} : vector<2x512xf32> to vector<2x128xf32>
    %235 = math.tanh %234 : vector<2x128xf32>
    %236 = vector.extract_strided_slice %221 {offsets = [0, 384], sizes = [2, 128], strides = [1, 1]} : vector<2x512xf32> to vector<2x128xf32>
    %237 = arith.negf %236 : vector<2x128xf32>
    %238 = math.exp %237 : vector<2x128xf32>
    %cst_78 = arith.constant 1.000000e+00 : f32
    %239 = vector.broadcast %cst_78 : f32 to vector<2x128xf32>
    %240 = arith.addf %239, %238 : vector<2x128xf32>
    %241 = arith.divf %239, %240 : vector<2x128xf32>
    %242 = arith.mulf %233, %215 : vector<2x128xf32>
    %243 = arith.mulf %227, %235 : vector<2x128xf32>
    %244 = arith.addf %242, %243 : vector<2x128xf32>
    %245 = math.tanh %244 : vector<2x128xf32>
    %246 = arith.mulf %241, %245 : vector<2x128xf32>
    %c7_79 = arith.constant 7 : index
    %c0_80 = arith.constant 0 : index
    %c0_81 = arith.constant 0 : index
    %247 = vector.load %arg5[%c7_79, %c0_80, %c0_81] : memref<8x2x512xf32, #tpu.memory_space<vmem>>, vector<1x2x512xf32>
    %248 = vector.shape_cast %247 : vector<1x2x512xf32> to vector<2x512xf32>
    %cst_82 = arith.constant dense<0.000000e+00> : vector<2x512xf32>
    %249 = tpu.matmul %246, %1, %cst_82 {dimension_numbers = #tpu.dot_dimension_numbers<[1], [0], [0], [1], [0, 0, 1, 1], [], []>} : vector<2x128xf32>, vector<128x512xf32>, vector<2x512xf32> -> vector<2x512xf32>
    %250 = arith.addf %248, %249 : vector<2x512xf32>
    %251 = vector.extract_strided_slice %250 {offsets = [0, 0], sizes = [2, 128], strides = [1, 1]} : vector<2x512xf32> to vector<2x128xf32>
    %252 = arith.negf %251 : vector<2x128xf32>
    %253 = math.exp %252 : vector<2x128xf32>
    %cst_83 = arith.constant 1.000000e+00 : f32
    %254 = vector.broadcast %cst_83 : f32 to vector<2x128xf32>
    %255 = arith.addf %254, %253 : vector<2x128xf32>
    %256 = arith.divf %254, %255 : vector<2x128xf32>
    %257 = vector.extract_strided_slice %250 {offsets = [0, 128], sizes = [2, 128], strides = [1, 1]} : vector<2x512xf32> to vector<2x128xf32>
    %258 = arith.negf %257 : vector<2x128xf32>
    %259 = math.exp %258 : vector<2x128xf32>
    %cst_84 = arith.constant 1.000000e+00 : f32
    %260 = vector.broadcast %cst_84 : f32 to vector<2x128xf32>
    %261 = arith.addf %260, %259 : vector<2x128xf32>
    %262 = arith.divf %260, %261 : vector<2x128xf32>
    %263 = vector.extract_strided_slice %250 {offsets = [0, 256], sizes = [2, 128], strides = [1, 1]} : vector<2x512xf32> to vector<2x128xf32>
    %264 = math.tanh %263 : vector<2x128xf32>
    %265 = vector.extract_strided_slice %250 {offsets = [0, 384], sizes = [2, 128], strides = [1, 1]} : vector<2x512xf32> to vector<2x128xf32>
    %266 = arith.negf %265 : vector<2x128xf32>
    %267 = math.exp %266 : vector<2x128xf32>
    %cst_85 = arith.constant 1.000000e+00 : f32
    %268 = vector.broadcast %cst_85 : f32 to vector<2x128xf32>
    %269 = arith.addf %268, %267 : vector<2x128xf32>
    %270 = arith.divf %268, %269 : vector<2x128xf32>
    %271 = arith.mulf %262, %244 : vector<2x128xf32>
    %272 = arith.mulf %256, %264 : vector<2x128xf32>
    %273 = arith.addf %271, %272 : vector<2x128xf32>
    %274 = math.tanh %273 : vector<2x128xf32>
    %275 = arith.mulf %270, %274 : vector<2x128xf32>
    %cst_86 = arith.constant 0.000000e+00 : f32
    %276 = vector.broadcast %cst_86 : f32 to vector<2x128xf32>
    %277 = arith.maximumf %275, %276 : vector<2x128xf32>
    %cst_87 = arith.constant dense<0.000000e+00> : vector<2x512xf32>
    %278 = tpu.matmul %277, %2, %cst_87 {dimension_numbers = #tpu.dot_dimension_numbers<[1], [0], [0], [1], [0, 0, 1, 1], [], []>} : vector<2x128xf32>, vector<128x512xf32>, vector<2x512xf32> -> vector<2x512xf32>
    %c1_88 = arith.constant 1 : index
    %c0_89 = arith.constant 0 : index
    %279 = vector.load %arg3[%c1_88, %c0_89] : memref<2x512xf32, #tpu.memory_space<vmem>>, vector<1x512xf32>
    %280 = vector.broadcast %279 : vector<1x512xf32> to vector<2x512xf32>
    %281 = arith.addf %278, %280 : vector<2x512xf32>
    %282 = vector.extract_strided_slice %281 {offsets = [0, 0], sizes = [2, 16], strides = [1, 1]} : vector<2x512xf32> to vector<2x16xf32>
    %283 = vector.extract_strided_slice %275 {offsets = [0, 0], sizes = [2, 32], strides = [1, 1]} : vector<2x128xf32> to vector<2x32xf32>
    %284 = vector.extract_strided_slice %273 {offsets = [0, 0], sizes = [2, 32], strides = [1, 1]} : vector<2x128xf32> to vector<2x32xf32>
    %285 = tpu.concatenate %282, %283, %284 in 1 : vector<2x16xf32>, vector<2x32xf32>, vector<2x32xf32> -> vector<2x80xf32>
    %c0_90 = arith.constant 0 : index
    %c0_91 = arith.constant 0 : index
    %286 = vector.load %arg4[%c0_90, %c0_91] : memref<2x80xf32, #tpu.memory_space<vmem>>, vector<2x80xf32>
    tpu.vector_store %arg4[%c0_90, %c0_91], %285 {strides = array<i32>} : memref<2x80xf32, #tpu.memory_space<vmem>>, vector<2x80xf32>,
    return
  }
}

</mosaic_0001>

<llo_original>
// kernel: autoregressive_lstm_forward.1
$region0: #{autoregressive_lstm_forward.1}
  #allocation0 [shape = 'u32[]', space=smem, size = 0x4, offset = 0x4, fixed_abs, tag = 'smem constant byte address 0x4 - core index']
  #allocation1 [shape = 'u32[144,128]{1,0:T(1,128)}', space=vmem, size = 0x12000, scoped, tag = 'internal scratch']
  #allocation2 [shape = 'f32[8,2,512]{2,1,0:T(2,128)}', space=vmem, size = 0x8000, scoped, tag = 'scratch operand']
  %s0 = inlined_call_operand.vmem [shape: f32[16,16], index: 0, kind: input, shape index: {}]
  %s1 = inlined_call_operand.vmem [shape: f32[2,2,128], index: 1, kind: input, shape index: {}]
  %s2 = inlined_call_operand.hbm [shape: f32[272,512], index: 2, kind: input, shape index: {}]
  %s3 = inlined_call_operand.vmem [shape: f32[2,512], index: 3, kind: input, shape index: {}]
  %s4 = inlined_call_operand.vmem [shape: f32[2,80], index: 4, kind: output, shape index: {}]
  %s5 = sld [smem:[#allocation0]]
  $region30: #{autoregressive_lstm_forward.1} parent=0
    _
  %s7 = ssub.s32 1, %s5
  %s8 = scalar_select 0, %s7, %s5
  $region1: #{autoregressive_lstm_forward.1} parent=0
    #allocation3 [shape = 'u8[557056]{0}', space=vmem, size = 0x88000, scoped, tag = 'input window, operand 2, single buffered']
    #allocation4 [shape = 's32[1]{0}', space=sflag, size = 0x4, scoped, tag = 'scoped memory for autoregressive_lstm_forward.1']
    %9 = vsyncpa [#allocation4], 0
    // Predicated region
    $region2: #{autoregressive_lstm_forward.1} parent=1 // pred_check
      _
    $region3: #{autoregressive_lstm_forward.1} parent=1 // pred_check_branch
      %11 = sbr.rel (0) target = $region5
    $region4: #{autoregressive_lstm_forward.1} parent=1 // pred_region
      _
    $region5: #{autoregressive_lstm_forward.1} parent=1 // pred_fallthru
      _
    // Predicated region
    $region6: #{autoregressive_lstm_forward.1} parent=1 // pred_check
      _
    $region7: #{autoregressive_lstm_forward.1} parent=1 // pred_check_branch
      %13 = sbr.rel (0) target = $region9
    $region8: #{autoregressive_lstm_forward.1} parent=1 // pred_region
      _
    $region9: #{autoregressive_lstm_forward.1} parent=1 // pred_fallthru
      _
    // Predicated region
    $region10: #{autoregressive_lstm_forward.1} parent=1 // pred_check
      _
    $region11: #{autoregressive_lstm_forward.1} parent=1 // pred_check_branch
      %15 = sbr.rel (0) target = $region13
    $region12: #{autoregressive_lstm_forward.1} parent=1 // pred_region
      %s17 = ssub.s32 17408, 17408
      %18 = vsyncadd [#allocation4], %s17
      %s19 = sshll.u32 [#allocation3], 4
      %s20 = int_to_ptr.vmem [resolvable:$true] %s19
      %25 = dma.hbm_to_vmem [thread:$0]  %s2, 17408, %s20, [#allocation4], 512, 512, 32
    $region13: #{autoregressive_lstm_forward.1} parent=1 // pred_fallthru
      _
    // Predicated region
    $region14: #{autoregressive_lstm_forward.1} parent=1 // pred_check
      _
    $region15: #{autoregressive_lstm_forward.1} parent=1 // pred_check_branch
      %27 = sbr.rel (0) target = $region17
    $region16: #{autoregressive_lstm_forward.1} parent=1 // pred_region
      _
    $region17: #{autoregressive_lstm_forward.1} parent=1 // pred_fallthru
      _
    // Predicated region
    $region18: #{autoregressive_lstm_forward.1} parent=1 // pred_check
      _
    $region19: #{autoregressive_lstm_forward.1} parent=1 // pred_check_branch
      %29 = sbr.rel (0) target = $region21
    $region20: #{autoregressive_lstm_forward.1} parent=1 // pred_region
      %30 = dma.done [#allocation4], 17408
    $region21: #{autoregressive_lstm_forward.1} parent=1 // pred_fallthru
      _
    %v31 = vld [vmem:[#allocation3] sm:$0xff]
    %v32 = vld [vmem:[#allocation3 + $0x8] sm:$0xff]
    %v33 = vld [vmem:[#allocation3 + $0x10] sm:$0xff]
    %v34 = vld [vmem:[#allocation3 + $0x18] sm:$0xff]
    %v35 = vld [vmem:[#allocation3 + $0x20] sm:$0xff]
    %v36 = vld [vmem:[#allocation3 + $0x28] sm:$0xff]
    %v37 = vld [vmem:[#allocation3 + $0x30] sm:$0xff]
    %v38 = vld [vmem:[#allocation3 + $0x38] sm:$0xff]
    %v39 = vld [vmem:[#allocation3 + $0x40] sm:$0xff]
    %v40 = vld [vmem:[#allocation3 + $0x48] sm:$0xff]
    %v41 = vld [vmem:[#allocation3 + $0x50] sm:$0xff]
    %v42 = vld [vmem:[#allocation3 + $0x58] sm:$0xff]
    %v43 = vld [vmem:[#allocation3 + $0x60] sm:$0xff]
    %v44 = vld [vmem:[#allocation3 + $0x68] sm:$0xff]
    %v45 = vld [vmem:[#allocation3 + $0x70] sm:$0xff]
    %v46 = vld [vmem:[#allocation3 + $0x78] sm:$0xff]
    %v47 = vld [vmem:[#allocation3 + $0x80] sm:$0xff]
    %v48 = vld [vmem:[#allocation3 + $0x88] sm:$0xff]
    %v49 = vld [vmem:[#allocation3 + $0x90] sm:$0xff]
    %v50 = vld [vmem:[#allocation3 + $0x98] sm:$0xff]
    %v51 = vld [vmem:[#allocation3 + $0xa0] sm:$0xff]
    %v52 = vld [vmem:[#allocation3 + $0xa8] sm:$0xff]
    %v53 = vld [vmem:[#allocation3 + $0xb0] sm:$0xff]
    %v54 = vld [vmem:[#allocation3 + $0xb8] sm:$0xff]
    %v55 = vld [vmem:[#allocation3 + $0xc0] sm:$0xff]
    %v56 = vld [vmem:[#allocation3 + $0xc8] sm:$0xff]
    %v57 = vld [vmem:[#allocation3 + $0xd0] sm:$0xff]
    %v58 = vld [vmem:[#allocation3 + $0xd8] sm:$0xff]
    %v59 = vld [vmem:[#allocation3 + $0xe0] sm:$0xff]
    %v60 = vld [vmem:[#allocation3 + $0xe8] sm:$0xff]
    %v61 = vld [vmem:[#allocation3 + $0xf0] sm:$0xff]
    %v62 = vld [vmem:[#allocation3 + $0xf8] sm:$0xff]
    %v63 = vld [vmem:[#allocation3 + $0x100] sm:$0xff]
    %v64 = vld [vmem:[#allocation3 + $0x108] sm:$0xff]
    %v65 = vld [vmem:[#allocation3 + $0x110] sm:$0xff]
    %v66 = vld [vmem:[#allocation3 + $0x118] sm:$0xff]
    %v67 = vld [vmem:[#allocation3 + $0x120] sm:$0xff]
    %v68 = vld [vmem:[#allocation3 + $0x128] sm:$0xff]
    %v69 = vld [vmem:[#allocation3 + $0x130] sm:$0xff]
    %v70 = vld [vmem:[#allocation3 + $0x138] sm:$0xff]
    %v71 = vld [vmem:[#allocation3 + $0x140] sm:$0xff]
    %v72 = vld [vmem:[#allocation3 + $0x148] sm:$0xff]
    %v73 = vld [vmem:[#allocation3 + $0x150] sm:$0xff]
    %v74 = vld [vmem:[#allocation3 + $0x158] sm:$0xff]
    %v75 = vld [vmem:[#allocation3 + $0x160] sm:$0xff]
    %v76 = vld [vmem:[#allocation3 + $0x168] sm:$0xff]
    %v77 = vld [vmem:[#allocation3 + $0x170] sm:$0xff]
    %v78 = vld [vmem:[#allocation3 + $0x178] sm:$0xff]
    %v79 = vld [vmem:[#allocation3 + $0x180] sm:$0xff]
    %v80 = vld [vmem:[#allocation3 + $0x188] sm:$0xff]
    %v81 = vld [vmem:[#allocation3 + $0x190] sm:$0xff]
    %v82 = vld [vmem:[#allocation3 + $0x198] sm:$0xff]
    %v83 = vld [vmem:[#allocation3 + $0x1a0] sm:$0xff]
    %v84 = vld [vmem:[#allocation3 + $0x1a8] sm:$0xff]
    %v85 = vld [vmem:[#allocation3 + $0x1b0] sm:$0xff]
    %v86 = vld [vmem:[#allocation3 + $0x1b8] sm:$0xff]
    %v87 = vld [vmem:[#allocation3 + $0x1c0] sm:$0xff]
    %v88 = vld [vmem:[#allocation3 + $0x1c8] sm:$0xff]
    %v89 = vld [vmem:[#allocation3 + $0x1d0] sm:$0xff]
    %v90 = vld [vmem:[#allocation3 + $0x1d8] sm:$0xff]
    %v91 = vld [vmem:[#allocation3 + $0x1e0] sm:$0xff]
    %v92 = vld [vmem:[#allocation3 + $0x1e8] sm:$0xff]
    %v93 = vld [vmem:[#allocation3 + $0x1f0] sm:$0xff]
    %v94 = vld [vmem:[#allocation3 + $0x1f8] sm:$0xff]
    %v95 = vld [vmem:[#allocation3 + $0x200] sm:$0xff]
    %v96 = vld [vmem:[#allocation3 + $0x208] sm:$0xff]
    %v97 = vld [vmem:[#allocation3 + $0x210] sm:$0xff]
    %v98 = vld [vmem:[#allocation3 + $0x218] sm:$0xff]
    %v99 = vld [vmem:[#allocation3 + $0x220] sm:$0xff]
    %v100 = vld [vmem:[#allocation3 + $0x228] sm:$0xff]
    %v101 = vld [vmem:[#allocation3 + $0x230] sm:$0xff]
    %v102 = vld [vmem:[#allocation3 + $0x238] sm:$0xff]
    %v103 = vld [vmem:[#allocation3 + $0x240] sm:$0xff]
    %v104 = vld [vmem:[#allocation3 + $0x248] sm:$0xff]
    %v105 = vld [vmem:[#allocation3 + $0x260] sm:$0xff]
    %v106 = vld [vmem:[#allocation3 + $0x268] sm:$0xff]
    %v107 = vld [vmem:[#allocation3 + $0x280] sm:$0xff]
    %v108 = vld [vmem:[#allocation3 + $0x288] sm:$0xff]
    %v109 = vld [vmem:[#allocation3 + $0x2a0] sm:$0xff]
    %v110 = vld [vmem:[#allocation3 + $0x2a8] sm:$0xff]
    %v111 = vld [vmem:[#allocation3 + $0x2c0] sm:$0xff]
    %v112 = vld [vmem:[#allocation3 + $0x2c8] sm:$0xff]
    %v113 = vld [vmem:[#allocation3 + $0x2e0] sm:$0xff]
    %v114 = vld [vmem:[#allocation3 + $0x2e8] sm:$0xff]
    %v115 = vld [vmem:[#allocation3 + $0x300] sm:$0xff]
    %v116 = vld [vmem:[#allocation3 + $0x308] sm:$0xff]
    %v117 = vld [vmem:[#allocation3 + $0x320] sm:$0xff]
    %v118 = vld [vmem:[#allocation3 + $0x328] sm:$0xff]
    %v119 = vld [vmem:[#allocation3 + $0x340] sm:$0xff]
    %v120 = vld [vmem:[#allocation3 + $0x348] sm:$0xff]
    %v121 = vld [vmem:[#allocation3 + $0x360] sm:$0xff]
    %v122 = vld [vmem:[#allocation3 + $0x368] sm:$0xff]
    %v123 = vld [vmem:[#allocation3 + $0x380] sm:$0xff]
    %v124 = vld [vmem:[#allocation3 + $0x388] sm:$0xff]
    %v125 = vld [vmem:[#allocation3 + $0x3a0] sm:$0xff]
    %v126 = vld [vmem:[#allocation3 + $0x3a8] sm:$0xff]
    %v127 = vld [vmem:[#allocation3 + $0x3c0] sm:$0xff]
    %v128 = vld [vmem:[#allocation3 + $0x3c8] sm:$0xff]
    %v129 = vld [vmem:[#allocation3 + $0x3e0] sm:$0xff]
    %v130 = vld [vmem:[#allocation3 + $0x3e8] sm:$0xff]
    %v131 = vld [vmem:[#allocation3 + $0x400] sm:$0xff]
    %v132 = vld [vmem:[#allocation3 + $0x408] sm:$0xff]
    %v133 = vld [vmem:[#allocation3 + $0x420] sm:$0xff]
    %v134 = vld [vmem:[#allocation3 + $0x428] sm:$0xff]
    %v135 = vld [vmem:[%s0] sm:$0xff]
    %v136 = vld [vmem:[%s0 + $0x8] sm:$0xff]
    %v137 = vld [vmem:[%s3] ss:$2 sm:$0xf]
    %v139 = vlaneseq
    %v140 = vshrl.u32 %v139, 7
    %v141 = vsub.s32 0, %v140
    %v142 = vrot.slane %v137, %v141
    %v143 = vlaneseq
    %v144 = vshrl.u32 %v143, 7
    %v145 = vsub.s32 1, %v144
    %v146 = vrot.slane %v137, %v145
    %v147 = vlaneseq
    %v148 = vshrl.u32 %v147, 7
    %v149 = vsub.s32 2, %v148
    %v150 = vrot.slane %v137, %v149
    %v151 = vlaneseq
    %v152 = vshrl.u32 %v151, 7
    %v153 = vsub.s32 3, %v152
    %v154 = vrot.slane %v137, %v153
    %vm159 = vcmask 130048
    %v161 = vsel %vm159, %v135, 0
    %v164 = vsel %vm159, %v136, 0
    %166 = vmatprep.subr.mxu0 %v32
    %167 = vmatpush1.msra.mxu0 %v31
    %168 = vmatprep.subr.mxu0 %v36
    %169 = vmatpush1.msra.mxu0 %v35
    %170 = vmatprep.subr.mxu0 0.0
    %171 = vmatpush1.msra.mxu0 0.0
    %172 = vmatprep.subr.mxu0 0.0
    %173 = vmatpush1.msra.mxu0 0.0
    %174 = vmatprep.subr.mxu0 0.0
    %175 = vmatpush1.msra.mxu0 0.0
    %176 = vmatprep.subr.mxu0 0.0
    %177 = vmatpush1.msra.mxu0 0.0
    %178 = vmatprep.subr.mxu0 0.0
    %179 = vmatpush1.msra.mxu0 0.0
    %180 = vmatprep.subr.mxu0 0.0
    %181 = vmatpush1.msra.mxu0 0.0
    %182 = vmatprep.subr.mxu0 0.0
    %183 = vmatpush1.msra.mxu0 0.0
    %184 = vmatprep.subr.mxu0 0.0
    %185 = vmatpush1.msra.mxu0 0.0
    %186 = vmatprep.subr.mxu0 0.0
    %187 = vmatpush1.msra.mxu0 0.0
    %188 = vmatprep.subr.mxu0 0.0
    %189 = vmatpush1.msra.mxu0 0.0
    %190 = vmatprep.subr.mxu0 0.0
    %191 = vmatpush1.msra.mxu0 0.0
    %192 = vmatprep.subr.mxu0 0.0
    %193 = vmatpush1.msra.mxu0 0.0
    %194 = vmatprep.subr.mxu0 0.0
    %195 = vmatpush1.msra.mxu0 0.0
    %196 = vmatprep.subr.mxu0 0.0
    %197 = vmatpush1.msra.mxu0 0.0
    %198 = vmatprep.subr.mxu0 0.0
    %199 = vmatpush1.msra.mxu0 0.0
    %200 = vmatprep.subr.mxu0 0.0
    %201 = vmatpush1.msra.mxu0 0.0
    %202 = vmatprep.subr.mxu0 0.0
    %203 = vmatpush1.msra.mxu0 0.0
    %204 = vmatprep.subr.mxu0 0.0
    %205 = vmatpush1.msra.mxu0 0.0
    %206 = vmatprep.subr.mxu0 0.0
    %207 = vmatpush1.msra.mxu0 0.0
    %208 = vmatprep.subr.mxu0 0.0
    %209 = vmatpush1.msra.mxu0 0.0
    %210 = vmatprep.subr.mxu0 0.0
    %211 = vmatpush1.msra.mxu0 0.0
    %212 = vmatprep.subr.mxu0 0.0
    %213 = vmatpush1.msra.mxu0 0.0
    %214 = vmatprep.subr.mxu0 0.0
    %215 = vmatpush1.msra.mxu0 0.0
    %216 = vmatprep.subr.mxu0 0.0
    %217 = vmatpush1.msra.mxu0 0.0
    %218 = vmatprep.subr.mxu0 0.0
    %219 = vmatpush1.msra.mxu0 0.0
    %220 = vmatprep.subr.mxu0 0.0
    %221 = vmatpush1.msra.mxu0 0.0
    %222 = vmatprep.subr.mxu0 0.0
    %223 = vmatpush1.msra.mxu0 0.0
    %224 = vmatprep.subr.mxu0 0.0
    %225 = vmatpush1.msra.mxu0 0.0
    %226 = vmatprep.subr.mxu0 0.0
    %227 = vmatpush1.msra.mxu0 0.0
    %228 = vmatprep.subr.mxu0 0.0
    %229 = vmatpush1.msra.mxu0 0.0
    %230 = vmatprep.mubr.f32.mxu0 0.0
    %231 = vmatmul.mubr.f32.gmra.mrb[0].mxu0 %v161
    %v232 = vpop.f32.mrb[0].mxu0
    %v233 = vadd.f32 %v142, %v232
    %v234 = vpop.f32.mrb[0].mxu0
    %v235 = vadd.f32 %v146, %v234
    %236 = vmatprep.mubr.f32.mxu0 0.0
    %237 = vmatmul.mubr.f32.gmra.mrb[0].mxu0 %v164
    %v238 = vpop.f32.mrb[0].mxu0
    %v239 = vadd.f32 %v142, %v238
    %v240 = vpop.f32.mrb[0].mxu0
    %v241 = vadd.f32 %v146, %v240
    %242 = vdwg.mxu0
    %243 = vmatprep.subr.mxu0 %v34
    %244 = vmatpush1.msra.mxu0 %v33
    %245 = vmatprep.subr.mxu0 %v38
    %246 = vmatpush1.msra.mxu0 %v37
    %247 = vmatprep.subr.mxu0 0.0
    %248 = vmatpush1.msra.mxu0 0.0
    %249 = vmatprep.subr.mxu0 0.0
    %250 = vmatpush1.msra.mxu0 0.0
    %251 = vmatprep.subr.mxu0 0.0
    %252 = vmatpush1.msra.mxu0 0.0
    %253 = vmatprep.subr.mxu0 0.0
    %254 = vmatpush1.msra.mxu0 0.0
    %255 = vmatprep.subr.mxu0 0.0
    %256 = vmatpush1.msra.mxu0 0.0
    %257 = vmatprep.subr.mxu0 0.0
    %258 = vmatpush1.msra.mxu0 0.0
    %259 = vmatprep.subr.mxu0 0.0
    %260 = vmatpush1.msra.mxu0 0.0
    %261 = vmatprep.subr.mxu0 0.0
    %262 = vmatpush1.msra.mxu0 0.0
    %263 = vmatprep.subr.mxu0 0.0
    %264 = vmatpush1.msra.mxu0 0.0
    %265 = vmatprep.subr.mxu0 0.0
    %266 = vmatpush1.msra.mxu0 0.0
    %267 = vmatprep.subr.mxu0 0.0
    %268 = vmatpush1.msra.mxu0 0.0
    %269 = vmatprep.subr.mxu0 0.0
    %270 = vmatpush1.msra.mxu0 0.0
    %271 = vmatprep.subr.mxu0 0.0
    %272 = vmatpush1.msra.mxu0 0.0
    %273 = vmatprep.subr.mxu0 0.0
    %274 = vmatpush1.msra.mxu0 0.0
    %275 = vmatprep.subr.mxu0 0.0
    %276 = vmatpush1.msra.mxu0 0.0
    %277 = vmatprep.subr.mxu0 0.0
    %278 = vmatpush1.msra.mxu0 0.0
    %279 = vmatprep.subr.mxu0 0.0
    %280 = vmatpush1.msra.mxu0 0.0
    %281 = vmatprep.subr.mxu0 0.0
    %282 = vmatpush1.msra.mxu0 0.0
    %283 = vmatprep.subr.mxu0 0.0
    %284 = vmatpush1.msra.mxu0 0.0
    %285 = vmatprep.subr.mxu0 0.0
    %286 = vmatpush1.msra.mxu0 0.0
    %287 = vmatprep.subr.mxu0 0.0
    %288 = vmatpush1.msra.mxu0 0.0
    %289 = vmatprep.subr.mxu0 0.0
    %290 = vmatpush1.msra.mxu0 0.0
    %291 = vmatprep.subr.mxu0 0.0
    %292 = vmatpush1.msra.mxu0 0.0
    %293 = vmatprep.subr.mxu0 0.0
    %294 = vmatpush1.msra.mxu0 0.0
    %295 = vmatprep.subr.mxu0 0.0
    %296 = vmatpush1.msra.mxu0 0.0
    %297 = vmatprep.subr.mxu0 0.0
    %298 = vmatpush1.msra.mxu0 0.0
    %299 = vmatprep.subr.mxu0 0.0
    %300 = vmatpush1.msra.mxu0 0.0
    %301 = vmatprep.subr.mxu0 0.0
    %302 = vmatpush1.msra.mxu0 0.0
    %303 = vmatprep.subr.mxu0 0.0
    %304 = vmatpush1.msra.mxu0 0.0
    %305 = vmatprep.subr.mxu0 0.0
    %306 = vmatpush1.msra.mxu0 0.0
    %307 = vmatprep.mubr.f32.mxu0 0.0
    %308 = vmatmul.mubr.f32.gmra.mrb[0].mxu0 %v161
    %v309 = vpop.f32.mrb[0].mxu0
    %v310 = vadd.f32 %v150, %v309
    %v311 = vpop.f32.mrb[0].mxu0
    %v312 = vadd.f32 %v154, %v311
    %313 = vmatprep.mubr.f32.mxu0 0.0
    %314 = vmatmul.mubr.f32.gmra.mrb[0].mxu0 %v164
    %v315 = vpop.f32.mrb[0].mxu0
    %v316 = vadd.f32 %v150, %v315
    %v317 = vpop.f32.mrb[0].mxu0
    %v318 = vadd.f32 %v154, %v317
    %319 = vdwg.mxu0
    %v324 = vcombine.low %v233, %v235
    %v325 = vcombine.low %v310, %v312
    %v327 = vunpack.c.l.s4 1983009808
    %v328 = vunpack.c.0.s8 %v327
    %v329 = vlaneseq
    %v330 = vshrl.u32 %v329, 7
    %v331 = vsub.s32 %v328, %v330
    %v332 = vrot.slane %v324, %v331
    %v334 = vunpack.c.l.s4 1983009808
    %v335 = vunpack.c.0.s8 %v334
    %v336 = vlaneseq
    %v337 = vshrl.u32 %v336, 7
    %v338 = vsub.s32 %v335, %v337
    %v339 = vrot.slane %v325, %v338
    %v340 = vcombine.low %v332, %v339
    %342 = vst [vmem:[#allocation2] sm:$0xff] %v340
    %v343 = vcombine.high %v332, %v339
    %s345 = scalar_lea.vmem [#allocation2], 8
    %346 = vst [vmem:[%s345] sm:$0xff] %v343
    %v347 = vcombine.high %v233, %v235
    %v348 = vcombine.high %v310, %v312
    %v350 = vunpack.c.l.s4 1983009808
    %v351 = vunpack.c.0.s8 %v350
    %v352 = vlaneseq
    %v353 = vshrl.u32 %v352, 7
    %v354 = vsub.s32 %v351, %v353
    %v355 = vrot.slane %v347, %v354
    %v357 = vunpack.c.l.s4 1983009808
    %v358 = vunpack.c.0.s8 %v357
    %v359 = vlaneseq
    %v360 = vshrl.u32 %v359, 7
    %v361 = vsub.s32 %v358, %v360
    %v362 = vrot.slane %v348, %v361
    %v363 = vcombine.low %v355, %v362
    %s365 = scalar_lea.vmem [#allocation2], 16
    %366 = vst [vmem:[%s365] sm:$0xff] %v363
    %v367 = vcombine.high %v355, %v362
    %s369 = scalar_lea.vmem [#allocation2], 24
    %370 = vst [vmem:[%s369] sm:$0xff] %v367
    %v375 = vcombine.low %v239, %v241
    %v376 = vcombine.low %v316, %v318
    %v378 = vunpack.c.l.s4 1983009808
    %v379 = vunpack.c.0.s8 %v378
    %v380 = vlaneseq
    %v381 = vshrl.u32 %v380, 7
    %v382 = vsub.s32 %v379, %v381
    %v383 = vrot.slane %v375, %v382
    %v385 = vunpack.c.l.s4 1983009808
    %v386 = vunpack.c.0.s8 %v385
    %v387 = vlaneseq
    %v388 = vshrl.u32 %v387, 7
    %v389 = vsub.s32 %v386, %v388
    %v390 = vrot.slane %v376, %v389
    %v391 = vcombine.low %v383, %v390
    %s393 = scalar_lea.vmem [#allocation2], 32
    %394 = vst [vmem:[%s393] sm:$0xff] %v391
    %v395 = vcombine.high %v383, %v390
    %s397 = scalar_lea.vmem [#allocation2], 40
    %398 = vst [vmem:[%s397] sm:$0xff] %v395
    %v399 = vcombine.high %v239, %v241
    %v400 = vcombine.high %v316, %v318
    %v402 = vunpack.c.l.s4 1983009808
    %v403 = vunpack.c.0.s8 %v402
    %v404 = vlaneseq
    %v405 = vshrl.u32 %v404, 7
    %v406 = vsub.s32 %v403, %v405
    %v407 = vrot.slane %v399, %v406
    %v409 = vunpack.c.l.s4 1983009808
    %v410 = vunpack.c.0.s8 %v409
    %v411 = vlaneseq
    %v412 = vshrl.u32 %v411, 7
    %v413 = vsub.s32 %v410, %v412
    %v414 = vrot.slane %v400, %v413
    %v415 = vcombine.low %v407, %v414
    %s417 = scalar_lea.vmem [#allocation2], 48
    %418 = vst [vmem:[%s417] sm:$0xff] %v415
    %v419 = vcombine.high %v407, %v414
    %s421 = scalar_lea.vmem [#allocation2], 56
    %422 = vst [vmem:[%s421] sm:$0xff] %v419
    %v423 = vld [vmem:[%s1] sm:$0x3]
    %s424 = scalar_lea.vmem %s1, 2
    %v425 = vld [vmem:[%s424] sm:$0x3]
    %v426 = vld [vmem:[#allocation2] sm:$0xff]
    %427 = vmatprep.subr.mxu0 %v40
    %428 = vmatpush1.msra.mxu0 %v39
    %429 = vmatprep.subr.mxu0 %v44
    %430 = vmatpush1.msra.mxu0 %v43
    %431 = vmatprep.subr.mxu0 %v48
    %432 = vmatpush1.msra.mxu0 %v47
    %433 = vmatprep.subr.mxu0 %v52
    %434 = vmatpush1.msra.mxu0 %v51
    %435 = vmatprep.subr.mxu0 %v56
    %436 = vmatpush1.msra.mxu0 %v55
    %437 = vmatprep.subr.mxu0 %v60
    %438 = vmatpush1.msra.mxu0 %v59
    %439 = vmatprep.subr.mxu0 %v64
    %440 = vmatpush1.msra.mxu0 %v63
    %441 = vmatprep.subr.mxu0 %v68
    %442 = vmatpush1.msra.mxu0 %v67
    %443 = vmatprep.subr.mxu0 %v72
    %444 = vmatpush1.msra.mxu0 %v71
    %445 = vmatprep.subr.mxu0 %v76
    %446 = vmatpush1.msra.mxu0 %v75
    %447 = vmatprep.subr.mxu0 %v80
    %448 = vmatpush1.msra.mxu0 %v79
    %449 = vmatprep.subr.mxu0 %v84
    %450 = vmatpush1.msra.mxu0 %v83
    %451 = vmatprep.subr.mxu0 %v88
    %452 = vmatpush1.msra.mxu0 %v87
    %453 = vmatprep.subr.mxu0 %v92
    %454 = vmatpush1.msra.mxu0 %v91
    %455 = vmatprep.subr.mxu0 %v96
    %456 = vmatpush1.msra.mxu0 %v95
    %457 = vmatprep.subr.mxu0 %v100
    %458 = vmatpush1.msra.mxu0 %v99
    %459 = vmatprep.subr.mxu0 0.0
    %460 = vmatpush1.msra.mxu0 0.0
    %461 = vmatprep.subr.mxu0 0.0
    %462 = vmatpush1.msra.mxu0 0.0
    %463 = vmatprep.subr.mxu0 0.0
    %464 = vmatpush1.msra.mxu0 0.0
    %465 = vmatprep.subr.mxu0 0.0
    %466 = vmatpush1.msra.mxu0 0.0
    %467 = vmatprep.subr.mxu0 0.0
    %468 = vmatpush1.msra.mxu0 0.0
    %469 = vmatprep.subr.mxu0 0.0
    %470 = vmatpush1.msra.mxu0 0.0
    %471 = vmatprep.subr.mxu0 0.0
    %472 = vmatpush1.msra.mxu0 0.0
    %473 = vmatprep.subr.mxu0 0.0
    %474 = vmatpush1.msra.mxu0 0.0
    %475 = vmatprep.subr.mxu0 0.0
    %476 = vmatpush1.msra.mxu0 0.0
    %477 = vmatprep.subr.mxu0 0.0
    %478 = vmatpush1.msra.mxu0 0.0
    %479 = vmatprep.subr.mxu0 0.0
    %480 = vmatpush1.msra.mxu0 0.0
    %481 = vmatprep.subr.mxu0 0.0
    %482 = vmatpush1.msra.mxu0 0.0
    %483 = vmatprep.subr.mxu0 0.0
    %484 = vmatpush1.msra.mxu0 0.0
    %485 = vmatprep.subr.mxu0 0.0
    %486 = vmatpush1.msra.mxu0 0.0
    %487 = vmatprep.subr.mxu0 0.0
    %488 = vmatpush1.msra.mxu0 0.0
    %489 = vmatprep.subr.mxu0 0.0
    %490 = vmatpush1.msra.mxu0 0.0
    %491 = vmatprep.mubr.f32.mxu0 0.0
    %492 = vmatmul.mubr.f32.gmra.mrb[0].mxu0 %v423
    %v493 = vpop.f32.mrb[0].mxu0
    %v494 = vadd.f32 0.0, %v493
    %v495 = vpop.f32.mrb[0].mxu0
    %v496 = vadd.f32 0.0, %v495
    %497 = vdwg.mxu0
    %498 = vmatprep.subr.mxu0 %v42
    %499 = vmatpush1.msra.mxu0 %v41
    %500 = vmatprep.subr.mxu0 %v46
    %501 = vmatpush1.msra.mxu0 %v45
    %502 = vmatprep.subr.mxu0 %v50
    %503 = vmatpush1.msra.mxu0 %v49
    %504 = vmatprep.subr.mxu0 %v54
    %505 = vmatpush1.msra.mxu0 %v53
    %506 = vmatprep.subr.mxu0 %v58
    %507 = vmatpush1.msra.mxu0 %v57
    %508 = vmatprep.subr.mxu0 %v62
    %509 = vmatpush1.msra.mxu0 %v61
    %510 = vmatprep.subr.mxu0 %v66
    %511 = vmatpush1.msra.mxu0 %v65
    %512 = vmatprep.subr.mxu0 %v70
    %513 = vmatpush1.msra.mxu0 %v69
    %514 = vmatprep.subr.mxu0 %v74
    %515 = vmatpush1.msra.mxu0 %v73
    %516 = vmatprep.subr.mxu0 %v78
    %517 = vmatpush1.msra.mxu0 %v77
    %518 = vmatprep.subr.mxu0 %v82
    %519 = vmatpush1.msra.mxu0 %v81
    %520 = vmatprep.subr.mxu0 %v86
    %521 = vmatpush1.msra.mxu0 %v85
    %522 = vmatprep.subr.mxu0 %v90
    %523 = vmatpush1.msra.mxu0 %v89
    %524 = vmatprep.subr.mxu0 %v94
    %525 = vmatpush1.msra.mxu0 %v93
    %526 = vmatprep.subr.mxu0 %v98
    %527 = vmatpush1.msra.mxu0 %v97
    %528 = vmatprep.subr.mxu0 %v102
    %529 = vmatpush1.msra.mxu0 %v101
    %530 = vmatprep.subr.mxu0 0.0
    %531 = vmatpush1.msra.mxu0 0.0
    %532 = vmatprep.subr.mxu0 0.0
    %533 = vmatpush1.msra.mxu0 0.0
    %534 = vmatprep.subr.mxu0 0.0
    %535 = vmatpush1.msra.mxu0 0.0
    %536 = vmatprep.subr.mxu0 0.0
    %537 = vmatpush1.msra.mxu0 0.0
    %538 = vmatprep.subr.mxu0 0.0
    %539 = vmatpush1.msra.mxu0 0.0
    %540 = vmatprep.subr.mxu0 0.0
    %541 = vmatpush1.msra.mxu0 0.0
    %542 = vmatprep.subr.mxu0 0.0
    %543 = vmatpush1.msra.mxu0 0.0
    %544 = vmatprep.subr.mxu0 0.0
    %545 = vmatpush1.msra.mxu0 0.0
    %546 = vmatprep.subr.mxu0 0.0
    %547 = vmatpush1.msra.mxu0 0.0
    %548 = vmatprep.subr.mxu0 0.0
    %549 = vmatpush1.msra.mxu0 0.0
    %550 = vmatprep.subr.mxu0 0.0
    %551 = vmatpush1.msra.mxu0 0.0
    %552 = vmatprep.subr.mxu0 0.0
    %553 = vmatpush1.msra.mxu0 0.0
    %554 = vmatprep.subr.mxu0 0.0
    %555 = vmatpush1.msra.mxu0 0.0
    %556 = vmatprep.subr.mxu0 0.0
    %557 = vmatpush1.msra.mxu0 0.0
    %558 = vmatprep.subr.mxu0 0.0
    %559 = vmatpush1.msra.mxu0 0.0
    %560 = vmatprep.subr.mxu0 0.0
    %561 = vmatpush1.msra.mxu0 0.0
    %562 = vmatprep.mubr.f32.mxu0 0.0
    %563 = vmatmul.mubr.f32.gmra.mrb[0].mxu0 %v423
    %v564 = vpop.f32.mrb[0].mxu0
    %v565 = vadd.f32 0.0, %v564
    %v566 = vpop.f32.mrb[0].mxu0
    %v567 = vadd.f32 0.0, %v566
    %568 = vdwg.mxu0
    %v573 = vcombine.low %v494, %v496
    %v574 = vcombine.low %v565, %v567
    %v576 = vunpack.c.l.s4 1983009808
    %v577 = vunpack.c.0.s8 %v576
    %v578 = vlaneseq
    %v579 = vshrl.u32 %v578, 7
    %v580 = vsub.s32 %v577, %v579
    %v581 = vrot.slane %v573, %v580
    %v583 = vunpack.c.l.s4 1983009808
    %v584 = vunpack.c.0.s8 %v583
    %v585 = vlaneseq
    %v586 = vshrl.u32 %v585, 7
    %v587 = vsub.s32 %v584, %v586
    %v588 = vrot.slane %v574, %v587
    %v589 = vcombine.low %v581, %v588
    %v591 = vadd.f32 %v426, %v589
    %v592 = vxor.u32 %v591, 2147483648
    %v593 = vmul.f32 %v592, 1.442695
    %v594 = vpow.pop %v593
    %v595 = vadd.f32 %v594, 1.0
    %v596 = vrcp.pop %v595
    %v597 = vmul.f32 1.0, %v596
    %v599 = vrot.slane %v591, 2
    %v601 = vxor.u32 %v599, 2147483648
    %v602 = vmul.f32 %v601, 1.442695
    %v603 = vpow.pop %v602
    %v604 = vadd.f32 %v603, 1.0
    %v605 = vrcp.pop %v604
    %v606 = vmul.f32 1.0, %v605
    %v607 = vrot.slane %v591, 4
    %v609 = vtanh.pop %v607
    %v610 = vrot.slane %v591, 6
    %v612 = vxor.u32 %v610, 2147483648
    %v613 = vmul.f32 %v612, 1.442695
    %v614 = vpow.pop %v613
    %v615 = vadd.f32 %v614, 1.0
    %v616 = vrcp.pop %v615
    %v617 = vmul.f32 1.0, %v616
    %v618 = vmul.f32 %v606, %v425
    %v619 = vmul.f32 %v597, %v609
    %v620 = vadd.f32 %v618, %v619
    %v621 = vtanh.pop %v620
    %v622 = vmul.f32 %v617, %v621
    %v623 = vld [vmem:[%s345] sm:$0xff]
    %624 = vmatprep.subr.mxu0 %v40
    %625 = vmatpush1.msra.mxu0 %v39
    %626 = vmatprep.subr.mxu0 %v44
    %627 = vmatpush1.msra.mxu0 %v43
    %628 = vmatprep.subr.mxu0 %v48
    %629 = vmatpush1.msra.mxu0 %v47
    %630 = vmatprep.subr.mxu0 %v52
    %631 = vmatpush1.msra.mxu0 %v51
    %632 = vmatprep.subr.mxu0 %v56
    %633 = vmatpush1.msra.mxu0 %v55
    %634 = vmatprep.subr.mxu0 %v60
    %635 = vmatpush1.msra.mxu0 %v59
    %636 = vmatprep.subr.mxu0 %v64
    %637 = vmatpush1.msra.mxu0 %v63
    %638 = vmatprep.subr.mxu0 %v68
    %639 = vmatpush1.msra.mxu0 %v67
    %640 = vmatprep.subr.mxu0 %v72
    %641 = vmatpush1.msra.mxu0 %v71
    %642 = vmatprep.subr.mxu0 %v76
    %643 = vmatpush1.msra.mxu0 %v75
    %644 = vmatprep.subr.mxu0 %v80
    %645 = vmatpush1.msra.mxu0 %v79
    %646 = vmatprep.subr.mxu0 %v84
    %647 = vmatpush1.msra.mxu0 %v83
    %648 = vmatprep.subr.mxu0 %v88
    %649 = vmatpush1.msra.mxu0 %v87
    %650 = vmatprep.subr.mxu0 %v92
    %651 = vmatpush1.msra.mxu0 %v91
    %652 = vmatprep.subr.mxu0 %v96
    %653 = vmatpush1.msra.mxu0 %v95
    %654 = vmatprep.subr.mxu0 %v100
    %655 = vmatpush1.msra.mxu0 %v99
    %656 = vmatprep.subr.mxu0 0.0
    %657 = vmatpush1.msra.mxu0 0.0
    %658 = vmatprep.subr.mxu0 0.0
    %659 = vmatpush1.msra.mxu0 0.0
    %660 = vmatprep.subr.mxu0 0.0
    %661 = vmatpush1.msra.mxu0 0.0
    %662 = vmatprep.subr.mxu0 0.0
    %663 = vmatpush1.msra.mxu0 0.0
    %664 = vmatprep.subr.mxu0 0.0
    %665 = vmatpush1.msra.mxu0 0.0
    %666 = vmatprep.subr.mxu0 0.0
    %667 = vmatpush1.msra.mxu0 0.0
    %668 = vmatprep.subr.mxu0 0.0
    %669 = vmatpush1.msra.mxu0 0.0
    %670 = vmatprep.subr.mxu0 0.0
    %671 = vmatpush1.msra.mxu0 0.0
    %672 = vmatprep.subr.mxu0 0.0
    %673 = vmatpush1.msra.mxu0 0.0
    %674 = vmatprep.subr.mxu0 0.0
    %675 = vmatpush1.msra.mxu0 0.0
    %676 = vmatprep.subr.mxu0 0.0
    %677 = vmatpush1.msra.mxu0 0.0
    %678 = vmatprep.subr.mxu0 0.0
    %679 = vmatpush1.msra.mxu0 0.0
    %680 = vmatprep.subr.mxu0 0.0
    %681 = vmatpush1.msra.mxu0 0.0
    %682 = vmatprep.subr.mxu0 0.0
    %683 = vmatpush1.msra.mxu0 0.0
    %684 = vmatprep.subr.mxu0 0.0
    %685 = vmatpush1.msra.mxu0 0.0
    %686 = vmatprep.subr.mxu0 0.0
    %687 = vmatpush1.msra.mxu0 0.0
    %688 = vmatprep.mubr.f32.mxu0 0.0
    %689 = vmatmul.mubr.f32.gmra.mrb[0].mxu0 %v622
    %v690 = vpop.f32.mrb[0].mxu0
    %v691 = vadd.f32 0.0, %v690
    %v692 = vpop.f32.mrb[0].mxu0
    %v693 = vadd.f32 0.0, %v692
    %694 = vdwg.mxu0
    %695 = vmatprep.subr.mxu0 %v42
    %696 = vmatpush1.msra.mxu0 %v41
    %697 = vmatprep.subr.mxu0 %v46
    %698 = vmatpush1.msra.mxu0 %v45
    %699 = vmatprep.subr.mxu0 %v50
    %700 = vmatpush1.msra.mxu0 %v49
    %701 = vmatprep.subr.mxu0 %v54
    %702 = vmatpush1.msra.mxu0 %v53
    %703 = vmatprep.subr.mxu0 %v58
    %704 = vmatpush1.msra.mxu0 %v57
    %705 = vmatprep.subr.mxu0 %v62
    %706 = vmatpush1.msra.mxu0 %v61
    %707 = vmatprep.subr.mxu0 %v66
    %708 = vmatpush1.msra.mxu0 %v65
    %709 = vmatprep.subr.mxu0 %v70
    %710 = vmatpush1.msra.mxu0 %v69
    %711 = vmatprep.subr.mxu0 %v74
    %712 = vmatpush1.msra.mxu0 %v73
    %713 = vmatprep.subr.mxu0 %v78
    %714 = vmatpush1.msra.mxu0 %v77
    %715 = vmatprep.subr.mxu0 %v82
    %716 = vmatpush1.msra.mxu0 %v81
    %717 = vmatprep.subr.mxu0 %v86
    %718 = vmatpush1.msra.mxu0 %v85
    %719 = vmatprep.subr.mxu0 %v90
    %720 = vmatpush1.msra.mxu0 %v89
    %721 = vmatprep.subr.mxu0 %v94
    %722 = vmatpush1.msra.mxu0 %v93
    %723 = vmatprep.subr.mxu0 %v98
    %724 = vmatpush1.msra.mxu0 %v97
    %725 = vmatprep.subr.mxu0 %v102
    %726 = vmatpush1.msra.mxu0 %v101
    %727 = vmatprep.subr.mxu0 0.0
    %728 = vmatpush1.msra.mxu0 0.0
    %729 = vmatprep.subr.mxu0 0.0
    %730 = vmatpush1.msra.mxu0 0.0
    %731 = vmatprep.subr.mxu0 0.0
    %732 = vmatpush1.msra.mxu0 0.0
    %733 = vmatprep.subr.mxu0 0.0
    %734 = vmatpush1.msra.mxu0 0.0
    %735 = vmatprep.subr.mxu0 0.0
    %736 = vmatpush1.msra.mxu0 0.0
    %737 = vmatprep.subr.mxu0 0.0
    %738 = vmatpush1.msra.mxu0 0.0
    %739 = vmatprep.subr.mxu0 0.0
    %740 = vmatpush1.msra.mxu0 0.0
    %741 = vmatprep.subr.mxu0 0.0
    %742 = vmatpush1.msra.mxu0 0.0
    %743 = vmatprep.subr.mxu0 0.0
    %744 = vmatpush1.msra.mxu0 0.0
    %745 = vmatprep.subr.mxu0 0.0
    %746 = vmatpush1.msra.mxu0 0.0
    %747 = vmatprep.subr.mxu0 0.0
    %748 = vmatpush1.msra.mxu0 0.0
    %749 = vmatprep.subr.mxu0 0.0
    %750 = vmatpush1.msra.mxu0 0.0
    %751 = vmatprep.subr.mxu0 0.0
    %752 = vmatpush1.msra.mxu0 0.0
    %753 = vmatprep.subr.mxu0 0.0
    %754 = vmatpush1.msra.mxu0 0.0
    %755 = vmatprep.subr.mxu0 0.0
    %756 = vmatpush1.msra.mxu0 0.0
    %757 = vmatprep.subr.mxu0 0.0
    %758 = vmatpush1.msra.mxu0 0.0
    %759 = vmatprep.mubr.f32.mxu0 0.0
    %760 = vmatmul.mubr.f32.gmra.mrb[0].mxu0 %v622
    %v761 = vpop.f32.mrb[0].mxu0
    %v762 = vadd.f32 0.0, %v761
    %v763 = vpop.f32.mrb[0].mxu0
    %v764 = vadd.f32 0.0, %v763
    %765 = vdwg.mxu0
    %v770 = vcombine.low %v691, %v693
    %v771 = vcombine.low %v762, %v764
    %v773 = vunpack.c.l.s4 1983009808
    %v774 = vunpack.c.0.s8 %v773
    %v775 = vlaneseq
    %v776 = vshrl.u32 %v775, 7
    %v777 = vsub.s32 %v774, %v776
    %v778 = vrot.slane %v770, %v777
    %v780 = vunpack.c.l.s4 1983009808
    %v781 = vunpack.c.0.s8 %v780
    %v782 = vlaneseq
    %v783 = vshrl.u32 %v782, 7
    %v784 = vsub.s32 %v781, %v783
    %v785 = vrot.slane %v771, %v784
    %v786 = vcombine.low %v778, %v785
    %v788 = vadd.f32 %v623, %v786
    %v789 = vxor.u32 %v788, 2147483648
    %v790 = vmul.f32 %v789, 1.442695
    %v791 = vpow.pop %v790
    %v792 = vadd.f32 %v791, 1.0
    %v793 = vrcp.pop %v792
    %v794 = vmul.f32 1.0, %v793
    %v796 = vrot.slane %v788, 2
    %v798 = vxor.u32 %v796, 2147483648
    %v799 = vmul.f32 %v798, 1.442695
    %v800 = vpow.pop %v799
    %v801 = vadd.f32 %v800, 1.0
    %v802 = vrcp.pop %v801
    %v803 = vmul.f32 1.0, %v802
    %v804 = vrot.slane %v788, 4
    %v806 = vtanh.pop %v804
    %v807 = vrot.slane %v788, 6
    %v809 = vxor.u32 %v807, 2147483648
    %v810 = vmul.f32 %v809, 1.442695
    %v811 = vpow.pop %v810
    %v812 = vadd.f32 %v811, 1.0
    %v813 = vrcp.pop %v812
    %v814 = vmul.f32 1.0, %v813
    %v815 = vmul.f32 %v803, %v620
    %v816 = vmul.f32 %v794, %v806
    %v817 = vadd.f32 %v815, %v816
    %v818 = vtanh.pop %v817
    %v819 = vmul.f32 %v814, %v818
    %v820 = vld [vmem:[%s365] sm:$0xff]
    %821 = vmatprep.subr.mxu0 %v40
    %822 = vmatpush1.msra.mxu0 %v39
    %823 = vmatprep.subr.mxu0 %v44
    %824 = vmatpush1.msra.mxu0 %v43
    %825 = vmatprep.subr.mxu0 %v48
    %826 = vmatpush1.msra.mxu0 %v47
    %827 = vmatprep.subr.mxu0 %v52
    %828 = vmatpush1.msra.mxu0 %v51
    %829 = vmatprep.subr.mxu0 %v56
    %830 = vmatpush1.msra.mxu0 %v55
    %831 = vmatprep.subr.mxu0 %v60
    %832 = vmatpush1.msra.mxu0 %v59
    %833 = vmatprep.subr.mxu0 %v64
    %834 = vmatpush1.msra.mxu0 %v63
    %835 = vmatprep.subr.mxu0 %v68
    %836 = vmatpush1.msra.mxu0 %v67
    %837 = vmatprep.subr.mxu0 %v72
    %838 = vmatpush1.msra.mxu0 %v71
    %839 = vmatprep.subr.mxu0 %v76
    %840 = vmatpush1.msra.mxu0 %v75
    %841 = vmatprep.subr.mxu0 %v80
    %842 = vmatpush1.msra.mxu0 %v79
    %843 = vmatprep.subr.mxu0 %v84
    %844 = vmatpush1.msra.mxu0 %v83
    %845 = vmatprep.subr.mxu0 %v88
    %846 = vmatpush1.msra.mxu0 %v87
    %847 = vmatprep.subr.mxu0 %v92
    %848 = vmatpush1.msra.mxu0 %v91
    %849 = vmatprep.subr.mxu0 %v96
    %850 = vmatpush1.msra.mxu0 %v95
    %851 = vmatprep.subr.mxu0 %v100
    %852 = vmatpush1.msra.mxu0 %v99
    %853 = vmatprep.subr.mxu0 0.0
    %854 = vmatpush1.msra.mxu0 0.0
    %855 = vmatprep.subr.mxu0 0.0
    %856 = vmatpush1.msra.mxu0 0.0
    %857 = vmatprep.subr.mxu0 0.0
    %858 = vmatpush1.msra.mxu0 0.0
    %859 = vmatprep.subr.mxu0 0.0
    %860 = vmatpush1.msra.mxu0 0.0
    %861 = vmatprep.subr.mxu0 0.0
    %862 = vmatpush1.msra.mxu0 0.0
    %863 = vmatprep.subr.mxu0 0.0
    %864 = vmatpush1.msra.mxu0 0.0
    %865 = vmatprep.subr.mxu0 0.0
    %866 = vmatpush1.msra.mxu0 0.0
    %867 = vmatprep.subr.mxu0 0.0
    %868 = vmatpush1.msra.mxu0 0.0
    %869 = vmatprep.subr.mxu0 0.0
    %870 = vmatpush1.msra.mxu0 0.0
    %871 = vmatprep.subr.mxu0 0.0
    %872 = vmatpush1.msra.mxu0 0.0
    %873 = vmatprep.subr.mxu0 0.0
    %874 = vmatpush1.msra.mxu0 0.0
    %875 = vmatprep.subr.mxu0 0.0
    %876 = vmatpush1.msra.mxu0 0.0
    %877 = vmatprep.subr.mxu0 0.0
    %878 = vmatpush1.msra.mxu0 0.0
    %879 = vmatprep.subr.mxu0 0.0
    %880 = vmatpush1.msra.mxu0 0.0
    %881 = vmatprep.subr.mxu0 0.0
    %882 = vmatpush1.msra.mxu0 0.0
    %883 = vmatprep.subr.mxu0 0.0
    %884 = vmatpush1.msra.mxu0 0.0
    %885 = vmatprep.mubr.f32.mxu0 0.0
    %886 = vmatmul.mubr.f32.gmra.mrb[0].mxu0 %v819
    %v887 = vpop.f32.mrb[0].mxu0
    %v888 = vadd.f32 0.0, %v887
    %v889 = vpop.f32.mrb[0].mxu0
    %v890 = vadd.f32 0.0, %v889
    %891 = vdwg.mxu0
    %892 = vmatprep.subr.mxu0 %v42
    %893 = vmatpush1.msra.mxu0 %v41
    %894 = vmatprep.subr.mxu0 %v46
    %895 = vmatpush1.msra.mxu0 %v45
    %896 = vmatprep.subr.mxu0 %v50
    %897 = vmatpush1.msra.mxu0 %v49
    %898 = vmatprep.subr.mxu0 %v54
    %899 = vmatpush1.msra.mxu0 %v53
    %900 = vmatprep.subr.mxu0 %v58
    %901 = vmatpush1.msra.mxu0 %v57
    %902 = vmatprep.subr.mxu0 %v62
    %903 = vmatpush1.msra.mxu0 %v61
    %904 = vmatprep.subr.mxu0 %v66
    %905 = vmatpush1.msra.mxu0 %v65
    %906 = vmatprep.subr.mxu0 %v70
    %907 = vmatpush1.msra.mxu0 %v69
    %908 = vmatprep.subr.mxu0 %v74
    %909 = vmatpush1.msra.mxu0 %v73
    %910 = vmatprep.subr.mxu0 %v78
    %911 = vmatpush1.msra.mxu0 %v77
    %912 = vmatprep.subr.mxu0 %v82
    %913 = vmatpush1.msra.mxu0 %v81
    %914 = vmatprep.subr.mxu0 %v86
    %915 = vmatpush1.msra.mxu0 %v85
    %916 = vmatprep.subr.mxu0 %v90
    %917 = vmatpush1.msra.mxu0 %v89
    %918 = vmatprep.subr.mxu0 %v94
    %919 = vmatpush1.msra.mxu0 %v93
    %920 = vmatprep.subr.mxu0 %v98
    %921 = vmatpush1.msra.mxu0 %v97
    %922 = vmatprep.subr.mxu0 %v102
    %923 = vmatpush1.msra.mxu0 %v101
    %924 = vmatprep.subr.mxu0 0.0
    %925 = vmatpush1.msra.mxu0 0.0
    %926 = vmatprep.subr.mxu0 0.0
    %927 = vmatpush1.msra.mxu0 0.0
    %928 = vmatprep.subr.mxu0 0.0
    %929 = vmatpush1.msra.mxu0 0.0
    %930 = vmatprep.subr.mxu0 0.0
    %931 = vmatpush1.msra.mxu0 0.0
    %932 = vmatprep.subr.mxu0 0.0
    %933 = vmatpush1.msra.mxu0 0.0
    %934 = vmatprep.subr.mxu0 0.0
    %935 = vmatpush1.msra.mxu0 0.0
    %936 = vmatprep.subr.mxu0 0.0
    %937 = vmatpush1.msra.mxu0 0.0
    %938 = vmatprep.subr.mxu0 0.0
    %939 = vmatpush1.msra.mxu0 0.0
    %940 = vmatprep.subr.mxu0 0.0
    %941 = vmatpush1.msra.mxu0 0.0
    %942 = vmatprep.subr.mxu0 0.0
    %943 = vmatpush1.msra.mxu0 0.0
    %944 = vmatprep.subr.mxu0 0.0
    %945 = vmatpush1.msra.mxu0 0.0
    %946 = vmatprep.subr.mxu0 0.0
    %947 = vmatpush1.msra.mxu0 0.0
    %948 = vmatprep.subr.mxu0 0.0
    %949 = vmatpush1.msra.mxu0 0.0
    %950 = vmatprep.subr.mxu0 0.0
    %951 = vmatpush1.msra.mxu0 0.0
    %952 = vmatprep.subr.mxu0 0.0
    %953 = vmatpush1.msra.mxu0 0.0
    %954 = vmatprep.subr.mxu0 0.0
    %955 = vmatpush1.msra.mxu0 0.0
    %956 = vmatprep.mubr.f32.mxu0 0.0
    %957 = vmatmul.mubr.f32.gmra.mrb[0].mxu0 %v819
    %v958 = vpop.f32.mrb[0].mxu0
    %v959 = vadd.f32 0.0, %v958
    %v960 = vpop.f32.mrb[0].mxu0
    %v961 = vadd.f32 0.0, %v960
    %962 = vdwg.mxu0
    %v967 = vcombine.low %v888, %v890
    %v968 = vcombine.low %v959, %v961
    %v970 = vunpack.c.l.s4 1983009808
    %v971 = vunpack.c.0.s8 %v970
    %v972 = vlaneseq
    %v973 = vshrl.u32 %v972, 7
    %v974 = vsub.s32 %v971, %v973
    %v975 = vrot.slane %v967, %v974
    %v977 = vunpack.c.l.s4 1983009808
    %v978 = vunpack.c.0.s8 %v977
    %v979 = vlaneseq
    %v980 = vshrl.u32 %v979, 7
    %v981 = vsub.s32 %v978, %v980
    %v982 = vrot.slane %v968, %v981
    %v983 = vcombine.low %v975, %v982
    %v985 = vadd.f32 %v820, %v983
    %v986 = vxor.u32 %v985, 2147483648
    %v987 = vmul.f32 %v986, 1.442695
    %v988 = vpow.pop %v987
    %v989 = vadd.f32 %v988, 1.0
    %v990 = vrcp.pop %v989
    %v991 = vmul.f32 1.0, %v990
    %v993 = vrot.slane %v985, 2
    %v995 = vxor.u32 %v993, 2147483648
    %v996 = vmul.f32 %v995, 1.442695
    %v997 = vpow.pop %v996
    %v998 = vadd.f32 %v997, 1.0
    %v999 = vrcp.pop %v998
    %v1000 = vmul.f32 1.0, %v999
    %v1001 = vrot.slane %v985, 4
    %v1003 = vtanh.pop %v1001
    %v1004 = vrot.slane %v985, 6
    %v1006 = vxor.u32 %v1004, 2147483648
    %v1007 = vmul.f32 %v1006, 1.442695
    %v1008 = vpow.pop %v1007
    %v1009 = vadd.f32 %v1008, 1.0
    %v1010 = vrcp.pop %v1009
    %v1011 = vmul.f32 1.0, %v1010
    %v1012 = vmul.f32 %v1000, %v817
    %v1013 = vmul.f32 %v991, %v1003
    %v1014 = vadd.f32 %v1012, %v1013
    %v1015 = vtanh.pop %v1014
    %v1016 = vmul.f32 %v1011, %v1015
    %v1017 = vld [vmem:[%s369] sm:$0xff]
    %1018 = vmatprep.subr.mxu0 %v40
    %1019 = vmatpush1.msra.mxu0 %v39
    %1020 = vmatprep.subr.mxu0 %v44
    %1021 = vmatpush1.msra.mxu0 %v43
    %1022 = vmatprep.subr.mxu0 %v48
    %1023 = vmatpush1.msra.mxu0 %v47
    %1024 = vmatprep.subr.mxu0 %v52
    %1025 = vmatpush1.msra.mxu0 %v51
    %1026 = vmatprep.subr.mxu0 %v56
    %1027 = vmatpush1.msra.mxu0 %v55
    %1028 = vmatprep.subr.mxu0 %v60
    %1029 = vmatpush1.msra.mxu0 %v59
    %1030 = vmatprep.subr.mxu0 %v64
    %1031 = vmatpush1.msra.mxu0 %v63
    %1032 = vmatprep.subr.mxu0 %v68
    %1033 = vmatpush1.msra.mxu0 %v67
    %1034 = vmatprep.subr.mxu0 %v72
    %1035 = vmatpush1.msra.mxu0 %v71
    %1036 = vmatprep.subr.mxu0 %v76
    %1037 = vmatpush1.msra.mxu0 %v75
    %1038 = vmatprep.subr.mxu0 %v80
    %1039 = vmatpush1.msra.mxu0 %v79
    %1040 = vmatprep.subr.mxu0 %v84
    %1041 = vmatpush1.msra.mxu0 %v83
    %1042 = vmatprep.subr.mxu0 %v88
    %1043 = vmatpush1.msra.mxu0 %v87
    %1044 = vmatprep.subr.mxu0 %v92
    %1045 = vmatpush1.msra.mxu0 %v91
    %1046 = vmatprep.subr.mxu0 %v96
    %1047 = vmatpush1.msra.mxu0 %v95
    %1048 = vmatprep.subr.mxu0 %v100
    %1049 = vmatpush1.msra.mxu0 %v99
    %1050 = vmatprep.subr.mxu0 0.0
    %1051 = vmatpush1.msra.mxu0 0.0
    %1052 = vmatprep.subr.mxu0 0.0
    %1053 = vmatpush1.msra.mxu0 0.0
    %1054 = vmatprep.subr.mxu0 0.0
    %1055 = vmatpush1.msra.mxu0 0.0
    %1056 = vmatprep.subr.mxu0 0.0
    %1057 = vmatpush1.msra.mxu0 0.0
    %1058 = vmatprep.subr.mxu0 0.0
    %1059 = vmatpush1.msra.mxu0 0.0
    %1060 = vmatprep.subr.mxu0 0.0
    %1061 = vmatpush1.msra.mxu0 0.0
    %1062 = vmatprep.subr.mxu0 0.0
    %1063 = vmatpush1.msra.mxu0 0.0
    %1064 = vmatprep.subr.mxu0 0.0
    %1065 = vmatpush1.msra.mxu0 0.0
    %1066 = vmatprep.subr.mxu0 0.0
    %1067 = vmatpush1.msra.mxu0 0.0
    %1068 = vmatprep.subr.mxu0 0.0
    %1069 = vmatpush1.msra.mxu0 0.0
    %1070 = vmatprep.subr.mxu0 0.0
    %1071 = vmatpush1.msra.mxu0 0.0
    %1072 = vmatprep.subr.mxu0 0.0
    %1073 = vmatpush1.msra.mxu0 0.0
    %1074 = vmatprep.subr.mxu0 0.0
    %1075 = vmatpush1.msra.mxu0 0.0
    %1076 = vmatprep.subr.mxu0 0.0
    %1077 = vmatpush1.msra.mxu0 0.0
    %1078 = vmatprep.subr.mxu0 0.0
    %1079 = vmatpush1.msra.mxu0 0.0
    %1080 = vmatprep.subr.mxu0 0.0
    %1081 = vmatpush1.msra.mxu0 0.0
    %1082 = vmatprep.mubr.f32.mxu0 0.0
    %1083 = vmatmul.mubr.f32.gmra.mrb[0].mxu0 %v1016
    %v1084 = vpop.f32.mrb[0].mxu0
    %v1085 = vadd.f32 0.0, %v1084
    %v1086 = vpop.f32.mrb[0].mxu0
    %v1087 = vadd.f32 0.0, %v1086
    %1088 = vdwg.mxu0
    %1089 = vmatprep.subr.mxu0 %v42
    %1090 = vmatpush1.msra.mxu0 %v41
    %1091 = vmatprep.subr.mxu0 %v46
    %1092 = vmatpush1.msra.mxu0 %v45
    %1093 = vmatprep.subr.mxu0 %v50
    %1094 = vmatpush1.msra.mxu0 %v49
    %1095 = vmatprep.subr.mxu0 %v54
    %1096 = vmatpush1.msra.mxu0 %v53
    %1097 = vmatprep.subr.mxu0 %v58
    %1098 = vmatpush1.msra.mxu0 %v57
    %1099 = vmatprep.subr.mxu0 %v62
    %1100 = vmatpush1.msra.mxu0 %v61
    %1101 = vmatprep.subr.mxu0 %v66
    %1102 = vmatpush1.msra.mxu0 %v65
    %1103 = vmatprep.subr.mxu0 %v70
    %1104 = vmatpush1.msra.mxu0 %v69
    %1105 = vmatprep.subr.mxu0 %v74
    %1106 = vmatpush1.msra.mxu0 %v73
    %1107 = vmatprep.subr.mxu0 %v78
    %1108 = vmatpush1.msra.mxu0 %v77
    %1109 = vmatprep.subr.mxu0 %v82
    %1110 = vmatpush1.msra.mxu0 %v81
    %1111 = vmatprep.subr.mxu0 %v86
    %1112 = vmatpush1.msra.mxu0 %v85
    %1113 = vmatprep.subr.mxu0 %v90
    %1114 = vmatpush1.msra.mxu0 %v89
    %1115 = vmatprep.subr.mxu0 %v94
    %1116 = vmatpush1.msra.mxu0 %v93
    %1117 = vmatprep.subr.mxu0 %v98
    %1118 = vmatpush1.msra.mxu0 %v97
    %1119 = vmatprep.subr.mxu0 %v102
    %1120 = vmatpush1.msra.mxu0 %v101
    %1121 = vmatprep.subr.mxu0 0.0
    %1122 = vmatpush1.msra.mxu0 0.0
    %1123 = vmatprep.subr.mxu0 0.0
    %1124 = vmatpush1.msra.mxu0 0.0
    %1125 = vmatprep.subr.mxu0 0.0
    %1126 = vmatpush1.msra.mxu0 0.0
    %1127 = vmatprep.subr.mxu0 0.0
    %1128 = vmatpush1.msra.mxu0 0.0
    %1129 = vmatprep.subr.mxu0 0.0
    %1130 = vmatpush1.msra.mxu0 0.0
    %1131 = vmatprep.subr.mxu0 0.0
    %1132 = vmatpush1.msra.mxu0 0.0
    %1133 = vmatprep.subr.mxu0 0.0
    %1134 = vmatpush1.msra.mxu0 0.0
    %1135 = vmatprep.subr.mxu0 0.0
    %1136 = vmatpush1.msra.mxu0 0.0
    %1137 = vmatprep.subr.mxu0 0.0
    %1138 = vmatpush1.msra.mxu0 0.0
    %1139 = vmatprep.subr.mxu0 0.0
    %1140 = vmatpush1.msra.mxu0 0.0
    %1141 = vmatprep.subr.mxu0 0.0
    %1142 = vmatpush1.msra.mxu0 0.0
    %1143 = vmatprep.subr.mxu0 0.0
    %1144 = vmatpush1.msra.mxu0 0.0
    %1145 = vmatprep.subr.mxu0 0.0
    %1146 = vmatpush1.msra.mxu0 0.0
    %1147 = vmatprep.subr.mxu0 0.0
    %1148 = vmatpush1.msra.mxu0 0.0
    %1149 = vmatprep.subr.mxu0 0.0
    %1150 = vmatpush1.msra.mxu0 0.0
    %1151 = vmatprep.subr.mxu0 0.0
    %1152 = vmatpush1.msra.mxu0 0.0
    %1153 = vmatprep.mubr.f32.mxu0 0.0
    %1154 = vmatmul.mubr.f32.gmra.mrb[0].mxu0 %v1016
    %v1155 = vpop.f32.mrb[0].mxu0
    %v1156 = vadd.f32 0.0, %v1155
    %v1157 = vpop.f32.mrb[0].mxu0
    %v1158 = vadd.f32 0.0, %v1157
    %1159 = vdwg.mxu0
    %v1164 = vcombine.low %v1085, %v1087
    %v1165 = vcombine.low %v1156, %v1158
    %v1167 = vunpack.c.l.s4 1983009808
    %v1168 = vunpack.c.0.s8 %v1167
    %v1169 = vlaneseq
    %v1170 = vshrl.u32 %v1169, 7
    %v1171 = vsub.s32 %v1168, %v1170
    %v1172 = vrot.slane %v1164, %v1171
    %v1174 = vunpack.c.l.s4 1983009808
    %v1175 = vunpack.c.0.s8 %v1174
    %v1176 = vlaneseq
    %v1177 = vshrl.u32 %v1176, 7
    %v1178 = vsub.s32 %v1175, %v1177
    %v1179 = vrot.slane %v1165, %v1178
    %v1180 = vcombine.low %v1172, %v1179
    %v1182 = vadd.f32 %v1017, %v1180
    %v1183 = vxor.u32 %v1182, 2147483648
    %v1184 = vmul.f32 %v1183, 1.442695
    %v1185 = vpow.pop %v1184
    %v1186 = vadd.f32 %v1185, 1.0
    %v1187 = vrcp.pop %v1186
    %v1188 = vmul.f32 1.0, %v1187
    %v1190 = vrot.slane %v1182, 2
    %v1192 = vxor.u32 %v1190, 2147483648
    %v1193 = vmul.f32 %v1192, 1.442695
    %v1194 = vpow.pop %v1193
    %v1195 = vadd.f32 %v1194, 1.0
    %v1196 = vrcp.pop %v1195
    %v1197 = vmul.f32 1.0, %v1196
    %v1198 = vrot.slane %v1182, 4
    %v1200 = vtanh.pop %v1198
    %v1201 = vrot.slane %v1182, 6
    %v1203 = vxor.u32 %v1201, 2147483648
    %v1204 = vmul.f32 %v1203, 1.442695
    %v1205 = vpow.pop %v1204
    %v1206 = vadd.f32 %v1205, 1.0
    %v1207 = vrcp.pop %v1206
    %v1208 = vmul.f32 1.0, %v1207
    %v1209 = vmul.f32 %v1197, %v1014
    %v1210 = vmul.f32 %v1188, %v1200
    %v1211 = vadd.f32 %v1209, %v1210
    %v1212 = vtanh.pop %v1211
    %v1213 = vmul.f32 %v1208, %v1212
    %v1214 = vld [vmem:[%s393] sm:$0xff]
    %1215 = vmatprep.subr.mxu0 %v40
    %1216 = vmatpush1.msra.mxu0 %v39
    %1217 = vmatprep.subr.mxu0 %v44
    %1218 = vmatpush1.msra.mxu0 %v43
    %1219 = vmatprep.subr.mxu0 %v48
    %1220 = vmatpush1.msra.mxu0 %v47
    %1221 = vmatprep.subr.mxu0 %v52
    %1222 = vmatpush1.msra.mxu0 %v51
    %1223 = vmatprep.subr.mxu0 %v56
    %1224 = vmatpush1.msra.mxu0 %v55
    %1225 = vmatprep.subr.mxu0 %v60
    %1226 = vmatpush1.msra.mxu0 %v59
    %1227 = vmatprep.subr.mxu0 %v64
    %1228 = vmatpush1.msra.mxu0 %v63
    %1229 = vmatprep.subr.mxu0 %v68
    %1230 = vmatpush1.msra.mxu0 %v67
    %1231 = vmatprep.subr.mxu0 %v72
    %1232 = vmatpush1.msra.mxu0 %v71
    %1233 = vmatprep.subr.mxu0 %v76
    %1234 = vmatpush1.msra.mxu0 %v75
    %1235 = vmatprep.subr.mxu0 %v80
    %1236 = vmatpush1.msra.mxu0 %v79
    %1237 = vmatprep.subr.mxu0 %v84
    %1238 = vmatpush1.msra.mxu0 %v83
    %1239 = vmatprep.subr.mxu0 %v88
    %1240 = vmatpush1.msra.mxu0 %v87
    %1241 = vmatprep.subr.mxu0 %v92
    %1242 = vmatpush1.msra.mxu0 %v91
    %1243 = vmatprep.subr.mxu0 %v96
    %1244 = vmatpush1.msra.mxu0 %v95
    %1245 = vmatprep.subr.mxu0 %v100
    %1246 = vmatpush1.msra.mxu0 %v99
    %1247 = vmatprep.subr.mxu0 0.0
    %1248 = vmatpush1.msra.mxu0 0.0
    %1249 = vmatprep.subr.mxu0 0.0
    %1250 = vmatpush1.msra.mxu0 0.0
    %1251 = vmatprep.subr.mxu0 0.0
    %1252 = vmatpush1.msra.mxu0 0.0
    %1253 = vmatprep.subr.mxu0 0.0
    %1254 = vmatpush1.msra.mxu0 0.0
    %1255 = vmatprep.subr.mxu0 0.0
    %1256 = vmatpush1.msra.mxu0 0.0
    %1257 = vmatprep.subr.mxu0 0.0
    %1258 = vmatpush1.msra.mxu0 0.0
    %1259 = vmatprep.subr.mxu0 0.0
    %1260 = vmatpush1.msra.mxu0 0.0
    %1261 = vmatprep.subr.mxu0 0.0
    %1262 = vmatpush1.msra.mxu0 0.0
    %1263 = vmatprep.subr.mxu0 0.0
    %1264 = vmatpush1.msra.mxu0 0.0
    %1265 = vmatprep.subr.mxu0 0.0
    %1266 = vmatpush1.msra.mxu0 0.0
    %1267 = vmatprep.subr.mxu0 0.0
    %1268 = vmatpush1.msra.mxu0 0.0
    %1269 = vmatprep.subr.mxu0 0.0
    %1270 = vmatpush1.msra.mxu0 0.0
    %1271 = vmatprep.subr.mxu0 0.0
    %1272 = vmatpush1.msra.mxu0 0.0
    %1273 = vmatprep.subr.mxu0 0.0
    %1274 = vmatpush1.msra.mxu0 0.0
    %1275 = vmatprep.subr.mxu0 0.0
    %1276 = vmatpush1.msra.mxu0 0.0
    %1277 = vmatprep.subr.mxu0 0.0
    %1278 = vmatpush1.msra.mxu0 0.0
    %1279 = vmatprep.mubr.f32.mxu0 0.0
    %1280 = vmatmul.mubr.f32.gmra.mrb[0].mxu0 %v1213
    %v1281 = vpop.f32.mrb[0].mxu0
    %v1282 = vadd.f32 0.0, %v1281
    %v1283 = vpop.f32.mrb[0].mxu0
    %v1284 = vadd.f32 0.0, %v1283
    %1285 = vdwg.mxu0
    %1286 = vmatprep.subr.mxu0 %v42
    %1287 = vmatpush1.msra.mxu0 %v41
    %1288 = vmatprep.subr.mxu0 %v46
    %1289 = vmatpush1.msra.mxu0 %v45
    %1290 = vmatprep.subr.mxu0 %v50
    %1291 = vmatpush1.msra.mxu0 %v49
    %1292 = vmatprep.subr.mxu0 %v54
    %1293 = vmatpush1.msra.mxu0 %v53
    %1294 = vmatprep.subr.mxu0 %v58
    %1295 = vmatpush1.msra.mxu0 %v57
    %1296 = vmatprep.subr.mxu0 %v62
    %1297 = vmatpush1.msra.mxu0 %v61
    %1298 = vmatprep.subr.mxu0 %v66
    %1299 = vmatpush1.msra.mxu0 %v65
    %1300 = vmatprep.subr.mxu0 %v70
    %1301 = vmatpush1.msra.mxu0 %v69
    %1302 = vmatprep.subr.mxu0 %v74
    %1303 = vmatpush1.msra.mxu0 %v73
    %1304 = vmatprep.subr.mxu0 %v78
    %1305 = vmatpush1.msra.mxu0 %v77
    %1306 = vmatprep.subr.mxu0 %v82
    %1307 = vmatpush1.msra.mxu0 %v81
    %1308 = vmatprep.subr.mxu0 %v86
    %1309 = vmatpush1.msra.mxu0 %v85
    %1310 = vmatprep.subr.mxu0 %v90
    %1311 = vmatpush1.msra.mxu0 %v89
    %1312 = vmatprep.subr.mxu0 %v94
    %1313 = vmatpush1.msra.mxu0 %v93
    %1314 = vmatprep.subr.mxu0 %v98
    %1315 = vmatpush1.msra.mxu0 %v97
    %1316 = vmatprep.subr.mxu0 %v102
    %1317 = vmatpush1.msra.mxu0 %v101
    %1318 = vmatprep.subr.mxu0 0.0
    %1319 = vmatpush1.msra.mxu0 0.0
    %1320 = vmatprep.subr.mxu0 0.0
    %1321 = vmatpush1.msra.mxu0 0.0
    %1322 = vmatprep.subr.mxu0 0.0
    %1323 = vmatpush1.msra.mxu0 0.0
    %1324 = vmatprep.subr.mxu0 0.0
    %1325 = vmatpush1.msra.mxu0 0.0
    %1326 = vmatprep.subr.mxu0 0.0
    %1327 = vmatpush1.msra.mxu0 0.0
    %1328 = vmatprep.subr.mxu0 0.0
    %1329 = vmatpush1.msra.mxu0 0.0
    %1330 = vmatprep.subr.mxu0 0.0
    %1331 = vmatpush1.msra.mxu0 0.0
    %1332 = vmatprep.subr.mxu0 0.0
    %1333 = vmatpush1.msra.mxu0 0.0
    %1334 = vmatprep.subr.mxu0 0.0
    %1335 = vmatpush1.msra.mxu0 0.0
    %1336 = vmatprep.subr.mxu0 0.0
    %1337 = vmatpush1.msra.mxu0 0.0
    %1338 = vmatprep.subr.mxu0 0.0
    %1339 = vmatpush1.msra.mxu0 0.0
    %1340 = vmatprep.subr.mxu0 0.0
    %1341 = vmatpush1.msra.mxu0 0.0
    %1342 = vmatprep.subr.mxu0 0.0
    %1343 = vmatpush1.msra.mxu0 0.0
    %1344 = vmatprep.subr.mxu0 0.0
    %1345 = vmatpush1.msra.mxu0 0.0
    %1346 = vmatprep.subr.mxu0 0.0
    %1347 = vmatpush1.msra.mxu0 0.0
    %1348 = vmatprep.subr.mxu0 0.0
    %1349 = vmatpush1.msra.mxu0 0.0
    %1350 = vmatprep.mubr.f32.mxu0 0.0
    %1351 = vmatmul.mubr.f32.gmra.mrb[0].mxu0 %v1213
    %v1352 = vpop.f32.mrb[0].mxu0
    %v1353 = vadd.f32 0.0, %v1352
    %v1354 = vpop.f32.mrb[0].mxu0
    %v1355 = vadd.f32 0.0, %v1354
    %1356 = vdwg.mxu0
    %v1361 = vcombine.low %v1282, %v1284
    %v1362 = vcombine.low %v1353, %v1355
    %v1364 = vunpack.c.l.s4 1983009808
    %v1365 = vunpack.c.0.s8 %v1364
    %v1366 = vlaneseq
    %v1367 = vshrl.u32 %v1366, 7
    %v1368 = vsub.s32 %v1365, %v1367
    %v1369 = vrot.slane %v1361, %v1368
    %v1371 = vunpack.c.l.s4 1983009808
    %v1372 = vunpack.c.0.s8 %v1371
    %v1373 = vlaneseq
    %v1374 = vshrl.u32 %v1373, 7
    %v1375 = vsub.s32 %v1372, %v1374
    %v1376 = vrot.slane %v1362, %v1375
    %v1377 = vcombine.low %v1369, %v1376
    %v1379 = vadd.f32 %v1214, %v1377
    %v1380 = vxor.u32 %v1379, 2147483648
    %v1381 = vmul.f32 %v1380, 1.442695
    %v1382 = vpow.pop %v1381
    %v1383 = vadd.f32 %v1382, 1.0
    %v1384 = vrcp.pop %v1383
    %v1385 = vmul.f32 1.0, %v1384
    %v1387 = vrot.slane %v1379, 2
    %v1389 = vxor.u32 %v1387, 2147483648
    %v1390 = vmul.f32 %v1389, 1.442695
    %v1391 = vpow.pop %v1390
    %v1392 = vadd.f32 %v1391, 1.0
    %v1393 = vrcp.pop %v1392
    %v1394 = vmul.f32 1.0, %v1393
    %v1395 = vrot.slane %v1379, 4
    %v1397 = vtanh.pop %v1395
    %v1398 = vrot.slane %v1379, 6
    %v1400 = vxor.u32 %v1398, 2147483648
    %v1401 = vmul.f32 %v1400, 1.442695
    %v1402 = vpow.pop %v1401
    %v1403 = vadd.f32 %v1402, 1.0
    %v1404 = vrcp.pop %v1403
    %v1405 = vmul.f32 1.0, %v1404
    %v1406 = vmul.f32 %v1394, %v1211
    %v1407 = vmul.f32 %v1385, %v1397
    %v1408 = vadd.f32 %v1406, %v1407
    %v1409 = vtanh.pop %v1408
    %v1410 = vmul.f32 %v1405, %v1409
    %v1411 = vld [vmem:[%s397] sm:$0xff]
    %1412 = vmatprep.subr.mxu0 %v40
    %1413 = vmatpush1.msra.mxu0 %v39
    %1414 = vmatprep.subr.mxu0 %v44
    %1415 = vmatpush1.msra.mxu0 %v43
    %1416 = vmatprep.subr.mxu0 %v48
    %1417 = vmatpush1.msra.mxu0 %v47
    %1418 = vmatprep.subr.mxu0 %v52
    %1419 = vmatpush1.msra.mxu0 %v51
    %1420 = vmatprep.subr.mxu0 %v56
    %1421 = vmatpush1.msra.mxu0 %v55
    %1422 = vmatprep.subr.mxu0 %v60
    %1423 = vmatpush1.msra.mxu0 %v59
    %1424 = vmatprep.subr.mxu0 %v64
    %1425 = vmatpush1.msra.mxu0 %v63
    %1426 = vmatprep.subr.mxu0 %v68
    %1427 = vmatpush1.msra.mxu0 %v67
    %1428 = vmatprep.subr.mxu0 %v72
    %1429 = vmatpush1.msra.mxu0 %v71
    %1430 = vmatprep.subr.mxu0 %v76
    %1431 = vmatpush1.msra.mxu0 %v75
    %1432 = vmatprep.subr.mxu0 %v80
    %1433 = vmatpush1.msra.mxu0 %v79
    %1434 = vmatprep.subr.mxu0 %v84
    %1435 = vmatpush1.msra.mxu0 %v83
    %1436 = vmatprep.subr.mxu0 %v88
    %1437 = vmatpush1.msra.mxu0 %v87
    %1438 = vmatprep.subr.mxu0 %v92
    %1439 = vmatpush1.msra.mxu0 %v91
    %1440 = vmatprep.subr.mxu0 %v96
    %1441 = vmatpush1.msra.mxu0 %v95
    %1442 = vmatprep.subr.mxu0 %v100
    %1443 = vmatpush1.msra.mxu0 %v99
    %1444 = vmatprep.subr.mxu0 0.0
    %1445 = vmatpush1.msra.mxu0 0.0
    %1446 = vmatprep.subr.mxu0 0.0
    %1447 = vmatpush1.msra.mxu0 0.0
    %1448 = vmatprep.subr.mxu0 0.0
    %1449 = vmatpush1.msra.mxu0 0.0
    %1450 = vmatprep.subr.mxu0 0.0
    %1451 = vmatpush1.msra.mxu0 0.0
    %1452 = vmatprep.subr.mxu0 0.0
    %1453 = vmatpush1.msra.mxu0 0.0
    %1454 = vmatprep.subr.mxu0 0.0
    %1455 = vmatpush1.msra.mxu0 0.0
    %1456 = vmatprep.subr.mxu0 0.0
    %1457 = vmatpush1.msra.mxu0 0.0
    %1458 = vmatprep.subr.mxu0 0.0
    %1459 = vmatpush1.msra.mxu0 0.0
    %1460 = vmatprep.subr.mxu0 0.0
    %1461 = vmatpush1.msra.mxu0 0.0
    %1462 = vmatprep.subr.mxu0 0.0
    %1463 = vmatpush1.msra.mxu0 0.0
    %1464 = vmatprep.subr.mxu0 0.0
    %1465 = vmatpush1.msra.mxu0 0.0
    %1466 = vmatprep.subr.mxu0 0.0
    %1467 = vmatpush1.msra.mxu0 0.0
    %1468 = vmatprep.subr.mxu0 0.0
    %1469 = vmatpush1.msra.mxu0 0.0
    %1470 = vmatprep.subr.mxu0 0.0
    %1471 = vmatpush1.msra.mxu0 0.0
    %1472 = vmatprep.subr.mxu0 0.0
    %1473 = vmatpush1.msra.mxu0 0.0
    %1474 = vmatprep.subr.mxu0 0.0
    %1475 = vmatpush1.msra.mxu0 0.0
    %1476 = vmatprep.mubr.f32.mxu0 0.0
    %1477 = vmatmul.mubr.f32.gmra.mrb[0].mxu0 %v1410
    %v1478 = vpop.f32.mrb[0].mxu0
    %v1479 = vadd.f32 0.0, %v1478
    %v1480 = vpop.f32.mrb[0].mxu0
    %v1481 = vadd.f32 0.0, %v1480
    %1482 = vdwg.mxu0
    %1483 = vmatprep.subr.mxu0 %v42
    %1484 = vmatpush1.msra.mxu0 %v41
    %1485 = vmatprep.subr.mxu0 %v46
    %1486 = vmatpush1.msra.mxu0 %v45
    %1487 = vmatprep.subr.mxu0 %v50
    %1488 = vmatpush1.msra.mxu0 %v49
    %1489 = vmatprep.subr.mxu0 %v54
    %1490 = vmatpush1.msra.mxu0 %v53
    %1491 = vmatprep.subr.mxu0 %v58
    %1492 = vmatpush1.msra.mxu0 %v57
    %1493 = vmatprep.subr.mxu0 %v62
    %1494 = vmatpush1.msra.mxu0 %v61
    %1495 = vmatprep.subr.mxu0 %v66
    %1496 = vmatpush1.msra.mxu0 %v65
    %1497 = vmatprep.subr.mxu0 %v70
    %1498 = vmatpush1.msra.mxu0 %v69
    %1499 = vmatprep.subr.mxu0 %v74
    %1500 = vmatpush1.msra.mxu0 %v73
    %1501 = vmatprep.subr.mxu0 %v78
    %1502 = vmatpush1.msra.mxu0 %v77
    %1503 = vmatprep.subr.mxu0 %v82
    %1504 = vmatpush1.msra.mxu0 %v81
    %1505 = vmatprep.subr.mxu0 %v86
    %1506 = vmatpush1.msra.mxu0 %v85
    %1507 = vmatprep.subr.mxu0 %v90
    %1508 = vmatpush1.msra.mxu0 %v89
    %1509 = vmatprep.subr.mxu0 %v94
    %1510 = vmatpush1.msra.mxu0 %v93
    %1511 = vmatprep.subr.mxu0 %v98
    %1512 = vmatpush1.msra.mxu0 %v97
    %1513 = vmatprep.subr.mxu0 %v102
    %1514 = vmatpush1.msra.mxu0 %v101
    %1515 = vmatprep.subr.mxu0 0.0
    %1516 = vmatpush1.msra.mxu0 0.0
    %1517 = vmatprep.subr.mxu0 0.0
    %1518 = vmatpush1.msra.mxu0 0.0
    %1519 = vmatprep.subr.mxu0 0.0
    %1520 = vmatpush1.msra.mxu0 0.0
    %1521 = vmatprep.subr.mxu0 0.0
    %1522 = vmatpush1.msra.mxu0 0.0
    %1523 = vmatprep.subr.mxu0 0.0
    %1524 = vmatpush1.msra.mxu0 0.0
    %1525 = vmatprep.subr.mxu0 0.0
    %1526 = vmatpush1.msra.mxu0 0.0
    %1527 = vmatprep.subr.mxu0 0.0
    %1528 = vmatpush1.msra.mxu0 0.0
    %1529 = vmatprep.subr.mxu0 0.0
    %1530 = vmatpush1.msra.mxu0 0.0
    %1531 = vmatprep.subr.mxu0 0.0
    %1532 = vmatpush1.msra.mxu0 0.0
    %1533 = vmatprep.subr.mxu0 0.0
    %1534 = vmatpush1.msra.mxu0 0.0
    %1535 = vmatprep.subr.mxu0 0.0
    %1536 = vmatpush1.msra.mxu0 0.0
    %1537 = vmatprep.subr.mxu0 0.0
    %1538 = vmatpush1.msra.mxu0 0.0
    %1539 = vmatprep.subr.mxu0 0.0
    %1540 = vmatpush1.msra.mxu0 0.0
    %1541 = vmatprep.subr.mxu0 0.0
    %1542 = vmatpush1.msra.mxu0 0.0
    %1543 = vmatprep.subr.mxu0 0.0
    %1544 = vmatpush1.msra.mxu0 0.0
    %1545 = vmatprep.subr.mxu0 0.0
    %1546 = vmatpush1.msra.mxu0 0.0
    %1547 = vmatprep.mubr.f32.mxu0 0.0
    %1548 = vmatmul.mubr.f32.gmra.mrb[0].mxu0 %v1410
    %v1549 = vpop.f32.mrb[0].mxu0
    %v1550 = vadd.f32 0.0, %v1549
    %v1551 = vpop.f32.mrb[0].mxu0
    %v1552 = vadd.f32 0.0, %v1551
    %1553 = vdwg.mxu0
    %v1558 = vcombine.low %v1479, %v1481
    %v1559 = vcombine.low %v1550, %v1552
    %v1561 = vunpack.c.l.s4 1983009808
    %v1562 = vunpack.c.0.s8 %v1561
    %v1563 = vlaneseq
    %v1564 = vshrl.u32 %v1563, 7
    %v1565 = vsub.s32 %v1562, %v1564
    %v1566 = vrot.slane %v1558, %v1565
    %v1568 = vunpack.c.l.s4 1983009808
    %v1569 = vunpack.c.0.s8 %v1568
    %v1570 = vlaneseq
    %v1571 = vshrl.u32 %v1570, 7
    %v1572 = vsub.s32 %v1569, %v1571
    %v1573 = vrot.slane %v1559, %v1572
    %v1574 = vcombine.low %v1566, %v1573
    %v1576 = vadd.f32 %v1411, %v1574
    %v1577 = vxor.u32 %v1576, 2147483648
    %v1578 = vmul.f32 %v1577, 1.442695
    %v1579 = vpow.pop %v1578
    %v1580 = vadd.f32 %v1579, 1.0
    %v1581 = vrcp.pop %v1580
    %v1582 = vmul.f32 1.0, %v1581
    %v1584 = vrot.slane %v1576, 2
    %v1586 = vxor.u32 %v1584, 2147483648
    %v1587 = vmul.f32 %v1586, 1.442695
    %v1588 = vpow.pop %v1587
    %v1589 = vadd.f32 %v1588, 1.0
    %v1590 = vrcp.pop %v1589
    %v1591 = vmul.f32 1.0, %v1590
    %v1592 = vrot.slane %v1576, 4
    %v1594 = vtanh.pop %v1592
    %v1595 = vrot.slane %v1576, 6
    %v1597 = vxor.u32 %v1595, 2147483648
    %v1598 = vmul.f32 %v1597, 1.442695
    %v1599 = vpow.pop %v1598
    %v1600 = vadd.f32 %v1599, 1.0
    %v1601 = vrcp.pop %v1600
    %v1602 = vmul.f32 1.0, %v1601
    %v1603 = vmul.f32 %v1591, %v1408
    %v1604 = vmul.f32 %v1582, %v1594
    %v1605 = vadd.f32 %v1603, %v1604
    %v1606 = vtanh.pop %v1605
    %v1607 = vmul.f32 %v1602, %v1606
    %v1608 = vld [vmem:[%s417] sm:$0xff]
    %1609 = vmatprep.subr.mxu0 %v40
    %1610 = vmatpush1.msra.mxu0 %v39
    %1611 = vmatprep.subr.mxu0 %v44
    %1612 = vmatpush1.msra.mxu0 %v43
    %1613 = vmatprep.subr.mxu0 %v48
    %1614 = vmatpush1.msra.mxu0 %v47
    %1615 = vmatprep.subr.mxu0 %v52
    %1616 = vmatpush1.msra.mxu0 %v51
    %1617 = vmatprep.subr.mxu0 %v56
    %1618 = vmatpush1.msra.mxu0 %v55
    %1619 = vmatprep.subr.mxu0 %v60
    %1620 = vmatpush1.msra.mxu0 %v59
    %1621 = vmatprep.subr.mxu0 %v64
    %1622 = vmatpush1.msra.mxu0 %v63
    %1623 = vmatprep.subr.mxu0 %v68
    %1624 = vmatpush1.msra.mxu0 %v67
    %1625 = vmatprep.subr.mxu0 %v72
    %1626 = vmatpush1.msra.mxu0 %v71
    %1627 = vmatprep.subr.mxu0 %v76
    %1628 = vmatpush1.msra.mxu0 %v75
    %1629 = vmatprep.subr.mxu0 %v80
    %1630 = vmatpush1.msra.mxu0 %v79
    %1631 = vmatprep.subr.mxu0 %v84
    %1632 = vmatpush1.msra.mxu0 %v83
    %1633 = vmatprep.subr.mxu0 %v88
    %1634 = vmatpush1.msra.mxu0 %v87
    %1635 = vmatprep.subr.mxu0 %v92
    %1636 = vmatpush1.msra.mxu0 %v91
    %1637 = vmatprep.subr.mxu0 %v96
    %1638 = vmatpush1.msra.mxu0 %v95
    %1639 = vmatprep.subr.mxu0 %v100
    %1640 = vmatpush1.msra.mxu0 %v99
    %1641 = vmatprep.subr.mxu0 0.0
    %1642 = vmatpush1.msra.mxu0 0.0
    %1643 = vmatprep.subr.mxu0 0.0
    %1644 = vmatpush1.msra.mxu0 0.0
    %1645 = vmatprep.subr.mxu0 0.0
    %1646 = vmatpush1.msra.mxu0 0.0
    %1647 = vmatprep.subr.mxu0 0.0
    %1648 = vmatpush1.msra.mxu0 0.0
    %1649 = vmatprep.subr.mxu0 0.0
    %1650 = vmatpush1.msra.mxu0 0.0
    %1651 = vmatprep.subr.mxu0 0.0
    %1652 = vmatpush1.msra.mxu0 0.0
    %1653 = vmatprep.subr.mxu0 0.0
    %1654 = vmatpush1.msra.mxu0 0.0
    %1655 = vmatprep.subr.mxu0 0.0
    %1656 = vmatpush1.msra.mxu0 0.0
    %1657 = vmatprep.subr.mxu0 0.0
    %1658 = vmatpush1.msra.mxu0 0.0
    %1659 = vmatprep.subr.mxu0 0.0
    %1660 = vmatpush1.msra.mxu0 0.0
    %1661 = vmatprep.subr.mxu0 0.0
    %1662 = vmatpush1.msra.mxu0 0.0
    %1663 = vmatprep.subr.mxu0 0.0
    %1664 = vmatpush1.msra.mxu0 0.0
    %1665 = vmatprep.subr.mxu0 0.0
    %1666 = vmatpush1.msra.mxu0 0.0
    %1667 = vmatprep.subr.mxu0 0.0
    %1668 = vmatpush1.msra.mxu0 0.0
    %1669 = vmatprep.subr.mxu0 0.0
    %1670 = vmatpush1.msra.mxu0 0.0
    %1671 = vmatprep.subr.mxu0 0.0
    %1672 = vmatpush1.msra.mxu0 0.0
    %1673 = vmatprep.mubr.f32.mxu0 0.0
    %1674 = vmatmul.mubr.f32.gmra.mrb[0].mxu0 %v1607
    %v1675 = vpop.f32.mrb[0].mxu0
    %v1676 = vadd.f32 0.0, %v1675
    %v1677 = vpop.f32.mrb[0].mxu0
    %v1678 = vadd.f32 0.0, %v1677
    %1679 = vdwg.mxu0
    %1680 = vmatprep.subr.mxu0 %v42
    %1681 = vmatpush1.msra.mxu0 %v41
    %1682 = vmatprep.subr.mxu0 %v46
    %1683 = vmatpush1.msra.mxu0 %v45
    %1684 = vmatprep.subr.mxu0 %v50
    %1685 = vmatpush1.msra.mxu0 %v49
    %1686 = vmatprep.subr.mxu0 %v54
    %1687 = vmatpush1.msra.mxu0 %v53
    %1688 = vmatprep.subr.mxu0 %v58
    %1689 = vmatpush1.msra.mxu0 %v57
    %1690 = vmatprep.subr.mxu0 %v62
    %1691 = vmatpush1.msra.mxu0 %v61
    %1692 = vmatprep.subr.mxu0 %v66
    %1693 = vmatpush1.msra.mxu0 %v65
    %1694 = vmatprep.subr.mxu0 %v70
    %1695 = vmatpush1.msra.mxu0 %v69
    %1696 = vmatprep.subr.mxu0 %v74
    %1697 = vmatpush1.msra.mxu0 %v73
    %1698 = vmatprep.subr.mxu0 %v78
    %1699 = vmatpush1.msra.mxu0 %v77
    %1700 = vmatprep.subr.mxu0 %v82
    %1701 = vmatpush1.msra.mxu0 %v81
    %1702 = vmatprep.subr.mxu0 %v86
    %1703 = vmatpush1.msra.mxu0 %v85
    %1704 = vmatprep.subr.mxu0 %v90
    %1705 = vmatpush1.msra.mxu0 %v89
    %1706 = vmatprep.subr.mxu0 %v94
    %1707 = vmatpush1.msra.mxu0 %v93
    %1708 = vmatprep.subr.mxu0 %v98
    %1709 = vmatpush1.msra.mxu0 %v97
    %1710 = vmatprep.subr.mxu0 %v102
    %1711 = vmatpush1.msra.mxu0 %v101
    %1712 = vmatprep.subr.mxu0 0.0
    %1713 = vmatpush1.msra.mxu0 0.0
    %1714 = vmatprep.subr.mxu0 0.0
    %1715 = vmatpush1.msra.mxu0 0.0
    %1716 = vmatprep.subr.mxu0 0.0
    %1717 = vmatpush1.msra.mxu0 0.0
    %1718 = vmatprep.subr.mxu0 0.0
    %1719 = vmatpush1.msra.mxu0 0.0
    %1720 = vmatprep.subr.mxu0 0.0
    %1721 = vmatpush1.msra.mxu0 0.0
    %1722 = vmatprep.subr.mxu0 0.0
    %1723 = vmatpush1.msra.mxu0 0.0
    %1724 = vmatprep.subr.mxu0 0.0
    %1725 = vmatpush1.msra.mxu0 0.0
    %1726 = vmatprep.subr.mxu0 0.0
    %1727 = vmatpush1.msra.mxu0 0.0
    %1728 = vmatprep.subr.mxu0 0.0
    %1729 = vmatpush1.msra.mxu0 0.0
    %1730 = vmatprep.subr.mxu0 0.0
    %1731 = vmatpush1.msra.mxu0 0.0
    %1732 = vmatprep.subr.mxu0 0.0
    %1733 = vmatpush1.msra.mxu0 0.0
    %1734 = vmatprep.subr.mxu0 0.0
    %1735 = vmatpush1.msra.mxu0 0.0
    %1736 = vmatprep.subr.mxu0 0.0
    %1737 = vmatpush1.msra.mxu0 0.0
    %1738 = vmatprep.subr.mxu0 0.0
    %1739 = vmatpush1.msra.mxu0 0.0
    %1740 = vmatprep.subr.mxu0 0.0
    %1741 = vmatpush1.msra.mxu0 0.0
    %1742 = vmatprep.subr.mxu0 0.0
    %1743 = vmatpush1.msra.mxu0 0.0
    %1744 = vmatprep.mubr.f32.mxu0 0.0
    %1745 = vmatmul.mubr.f32.gmra.mrb[0].mxu0 %v1607
    %v1746 = vpop.f32.mrb[0].mxu0
    %v1747 = vadd.f32 0.0, %v1746
    %v1748 = vpop.f32.mrb[0].mxu0
    %v1749 = vadd.f32 0.0, %v1748
    %1750 = vdwg.mxu0
    %v1755 = vcombine.low %v1676, %v1678
    %v1756 = vcombine.low %v1747, %v1749
    %v1758 = vunpack.c.l.s4 1983009808
    %v1759 = vunpack.c.0.s8 %v1758
    %v1760 = vlaneseq
    %v1761 = vshrl.u32 %v1760, 7
    %v1762 = vsub.s32 %v1759, %v1761
    %v1763 = vrot.slane %v1755, %v1762
    %v1765 = vunpack.c.l.s4 1983009808
    %v1766 = vunpack.c.0.s8 %v1765
    %v1767 = vlaneseq
    %v1768 = vshrl.u32 %v1767, 7
    %v1769 = vsub.s32 %v1766, %v1768
    %v1770 = vrot.slane %v1756, %v1769
    %v1771 = vcombine.low %v1763, %v1770
    %v1773 = vadd.f32 %v1608, %v1771
    %v1774 = vxor.u32 %v1773, 2147483648
    %v1775 = vmul.f32 %v1774, 1.442695
    %v1776 = vpow.pop %v1775
    %v1777 = vadd.f32 %v1776, 1.0
    %v1778 = vrcp.pop %v1777
    %v1779 = vmul.f32 1.0, %v1778
    %v1781 = vrot.slane %v1773, 2
    %v1783 = vxor.u32 %v1781, 2147483648
    %v1784 = vmul.f32 %v1783, 1.442695
    %v1785 = vpow.pop %v1784
    %v1786 = vadd.f32 %v1785, 1.0
    %v1787 = vrcp.pop %v1786
    %v1788 = vmul.f32 1.0, %v1787
    %v1789 = vrot.slane %v1773, 4
    %v1791 = vtanh.pop %v1789
    %v1792 = vrot.slane %v1773, 6
    %v1794 = vxor.u32 %v1792, 2147483648
    %v1795 = vmul.f32 %v1794, 1.442695
    %v1796 = vpow.pop %v1795
    %v1797 = vadd.f32 %v1796, 1.0
    %v1798 = vrcp.pop %v1797
    %v1799 = vmul.f32 1.0, %v1798
    %v1800 = vmul.f32 %v1788, %v1605
    %v1801 = vmul.f32 %v1779, %v1791
    %v1802 = vadd.f32 %v1800, %v1801
    %v1803 = vtanh.pop %v1802
    %v1804 = vmul.f32 %v1799, %v1803
    %v1805 = vld [vmem:[%s421] sm:$0xff]
    %1806 = vmatprep.subr.mxu0 %v40
    %1807 = vmatpush1.msra.mxu0 %v39
    %1808 = vmatprep.subr.mxu0 %v44
    %1809 = vmatpush1.msra.mxu0 %v43
    %1810 = vmatprep.subr.mxu0 %v48
    %1811 = vmatpush1.msra.mxu0 %v47
    %1812 = vmatprep.subr.mxu0 %v52
    %1813 = vmatpush1.msra.mxu0 %v51
    %1814 = vmatprep.subr.mxu0 %v56
    %1815 = vmatpush1.msra.mxu0 %v55
    %1816 = vmatprep.subr.mxu0 %v60
    %1817 = vmatpush1.msra.mxu0 %v59
    %1818 = vmatprep.subr.mxu0 %v64
    %1819 = vmatpush1.msra.mxu0 %v63
    %1820 = vmatprep.subr.mxu0 %v68
    %1821 = vmatpush1.msra.mxu0 %v67
    %1822 = vmatprep.subr.mxu0 %v72
    %1823 = vmatpush1.msra.mxu0 %v71
    %1824 = vmatprep.subr.mxu0 %v76
    %1825 = vmatpush1.msra.mxu0 %v75
    %1826 = vmatprep.subr.mxu0 %v80
    %1827 = vmatpush1.msra.mxu0 %v79
    %1828 = vmatprep.subr.mxu0 %v84
    %1829 = vmatpush1.msra.mxu0 %v83
    %1830 = vmatprep.subr.mxu0 %v88
    %1831 = vmatpush1.msra.mxu0 %v87
    %1832 = vmatprep.subr.mxu0 %v92
    %1833 = vmatpush1.msra.mxu0 %v91
    %1834 = vmatprep.subr.mxu0 %v96
    %1835 = vmatpush1.msra.mxu0 %v95
    %1836 = vmatprep.subr.mxu0 %v100
    %1837 = vmatpush1.msra.mxu0 %v99
    %1838 = vmatprep.subr.mxu0 0.0
    %1839 = vmatpush1.msra.mxu0 0.0
    %1840 = vmatprep.subr.mxu0 0.0
    %1841 = vmatpush1.msra.mxu0 0.0
    %1842 = vmatprep.subr.mxu0 0.0
    %1843 = vmatpush1.msra.mxu0 0.0
    %1844 = vmatprep.subr.mxu0 0.0
    %1845 = vmatpush1.msra.mxu0 0.0
    %1846 = vmatprep.subr.mxu0 0.0
    %1847 = vmatpush1.msra.mxu0 0.0
    %1848 = vmatprep.subr.mxu0 0.0
    %1849 = vmatpush1.msra.mxu0 0.0
    %1850 = vmatprep.subr.mxu0 0.0
    %1851 = vmatpush1.msra.mxu0 0.0
    %1852 = vmatprep.subr.mxu0 0.0
    %1853 = vmatpush1.msra.mxu0 0.0
    %1854 = vmatprep.subr.mxu0 0.0
    %1855 = vmatpush1.msra.mxu0 0.0
    %1856 = vmatprep.subr.mxu0 0.0
    %1857 = vmatpush1.msra.mxu0 0.0
    %1858 = vmatprep.subr.mxu0 0.0
    %1859 = vmatpush1.msra.mxu0 0.0
    %1860 = vmatprep.subr.mxu0 0.0
    %1861 = vmatpush1.msra.mxu0 0.0
    %1862 = vmatprep.subr.mxu0 0.0
    %1863 = vmatpush1.msra.mxu0 0.0
    %1864 = vmatprep.subr.mxu0 0.0
    %1865 = vmatpush1.msra.mxu0 0.0
    %1866 = vmatprep.subr.mxu0 0.0
    %1867 = vmatpush1.msra.mxu0 0.0
    %1868 = vmatprep.subr.mxu0 0.0
    %1869 = vmatpush1.msra.mxu0 0.0
    %1870 = vmatprep.mubr.f32.mxu0 0.0
    %1871 = vmatmul.mubr.f32.gmra.mrb[0].mxu0 %v1804
    %v1872 = vpop.f32.mrb[0].mxu0
    %v1873 = vadd.f32 0.0, %v1872
    %v1874 = vpop.f32.mrb[0].mxu0
    %v1875 = vadd.f32 0.0, %v1874
    %1876 = vdwg.mxu0
    %1877 = vmatprep.subr.mxu0 %v42
    %1878 = vmatpush1.msra.mxu0 %v41
    %1879 = vmatprep.subr.mxu0 %v46
    %1880 = vmatpush1.msra.mxu0 %v45
    %1881 = vmatprep.subr.mxu0 %v50
    %1882 = vmatpush1.msra.mxu0 %v49
    %1883 = vmatprep.subr.mxu0 %v54
    %1884 = vmatpush1.msra.mxu0 %v53
    %1885 = vmatprep.subr.mxu0 %v58
    %1886 = vmatpush1.msra.mxu0 %v57
    %1887 = vmatprep.subr.mxu0 %v62
    %1888 = vmatpush1.msra.mxu0 %v61
    %1889 = vmatprep.subr.mxu0 %v66
    %1890 = vmatpush1.msra.mxu0 %v65
    %1891 = vmatprep.subr.mxu0 %v70
    %1892 = vmatpush1.msra.mxu0 %v69
    %1893 = vmatprep.subr.mxu0 %v74
    %1894 = vmatpush1.msra.mxu0 %v73
    %1895 = vmatprep.subr.mxu0 %v78
    %1896 = vmatpush1.msra.mxu0 %v77
    %1897 = vmatprep.subr.mxu0 %v82
    %1898 = vmatpush1.msra.mxu0 %v81
    %1899 = vmatprep.subr.mxu0 %v86
    %1900 = vmatpush1.msra.mxu0 %v85
    %1901 = vmatprep.subr.mxu0 %v90
    %1902 = vmatpush1.msra.mxu0 %v89
    %1903 = vmatprep.subr.mxu0 %v94
    %1904 = vmatpush1.msra.mxu0 %v93
    %1905 = vmatprep.subr.mxu0 %v98
    %1906 = vmatpush1.msra.mxu0 %v97
    %1907 = vmatprep.subr.mxu0 %v102
    %1908 = vmatpush1.msra.mxu0 %v101
    %1909 = vmatprep.subr.mxu0 0.0
    %1910 = vmatpush1.msra.mxu0 0.0
    %1911 = vmatprep.subr.mxu0 0.0
    %1912 = vmatpush1.msra.mxu0 0.0
    %1913 = vmatprep.subr.mxu0 0.0
    %1914 = vmatpush1.msra.mxu0 0.0
    %1915 = vmatprep.subr.mxu0 0.0
    %1916 = vmatpush1.msra.mxu0 0.0
    %1917 = vmatprep.subr.mxu0 0.0
    %1918 = vmatpush1.msra.mxu0 0.0
    %1919 = vmatprep.subr.mxu0 0.0
    %1920 = vmatpush1.msra.mxu0 0.0
    %1921 = vmatprep.subr.mxu0 0.0
    %1922 = vmatpush1.msra.mxu0 0.0
    %1923 = vmatprep.subr.mxu0 0.0
    %1924 = vmatpush1.msra.mxu0 0.0
    %1925 = vmatprep.subr.mxu0 0.0
    %1926 = vmatpush1.msra.mxu0 0.0
    %1927 = vmatprep.subr.mxu0 0.0
    %1928 = vmatpush1.msra.mxu0 0.0
    %1929 = vmatprep.subr.mxu0 0.0
    %1930 = vmatpush1.msra.mxu0 0.0
    %1931 = vmatprep.subr.mxu0 0.0
    %1932 = vmatpush1.msra.mxu0 0.0
    %1933 = vmatprep.subr.mxu0 0.0
    %1934 = vmatpush1.msra.mxu0 0.0
    %1935 = vmatprep.subr.mxu0 0.0
    %1936 = vmatpush1.msra.mxu0 0.0
    %1937 = vmatprep.subr.mxu0 0.0
    %1938 = vmatpush1.msra.mxu0 0.0
    %1939 = vmatprep.subr.mxu0 0.0
    %1940 = vmatpush1.msra.mxu0 0.0
    %1941 = vmatprep.mubr.f32.mxu0 0.0
    %1942 = vmatmul.mubr.f32.gmra.mrb[0].mxu0 %v1804
    %v1943 = vpop.f32.mrb[0].mxu0
    %v1944 = vadd.f32 0.0, %v1943
    %v1945 = vpop.f32.mrb[0].mxu0
    %v1946 = vadd.f32 0.0, %v1945
    %1947 = vdwg.mxu0
    %v1952 = vcombine.low %v1873, %v1875
    %v1953 = vcombine.low %v1944, %v1946
    %v1955 = vunpack.c.l.s4 1983009808
    %v1956 = vunpack.c.0.s8 %v1955
    %v1957 = vlaneseq
    %v1958 = vshrl.u32 %v1957, 7
    %v1959 = vsub.s32 %v1956, %v1958
    %v1960 = vrot.slane %v1952, %v1959
    %v1962 = vunpack.c.l.s4 1983009808
    %v1963 = vunpack.c.0.s8 %v1962
    %v1964 = vlaneseq
    %v1965 = vshrl.u32 %v1964, 7
    %v1966 = vsub.s32 %v1963, %v1965
    %v1967 = vrot.slane %v1953, %v1966
    %v1968 = vcombine.low %v1960, %v1967
    %v1970 = vadd.f32 %v1805, %v1968
    %v1971 = vxor.u32 %v1970, 2147483648
    %v1972 = vmul.f32 %v1971, 1.442695
    %v1973 = vpow.pop %v1972
    %v1974 = vadd.f32 %v1973, 1.0
    %v1975 = vrcp.pop %v1974
    %v1976 = vmul.f32 1.0, %v1975
    %v1978 = vrot.slane %v1970, 2
    %v1980 = vxor.u32 %v1978, 2147483648
    %v1981 = vmul.f32 %v1980, 1.442695
    %v1982 = vpow.pop %v1981
    %v1983 = vadd.f32 %v1982, 1.0
    %v1984 = vrcp.pop %v1983
    %v1985 = vmul.f32 1.0, %v1984
    %v1986 = vrot.slane %v1970, 4
    %v1988 = vtanh.pop %v1986
    %v1989 = vrot.slane %v1970, 6
    %v1991 = vxor.u32 %v1989, 2147483648
    %v1992 = vmul.f32 %v1991, 1.442695
    %v1993 = vpow.pop %v1992
    %v1994 = vadd.f32 %v1993, 1.0
    %v1995 = vrcp.pop %v1994
    %v1996 = vmul.f32 1.0, %v1995
    %v1997 = vmul.f32 %v1985, %v1802
    %v1998 = vmul.f32 %v1976, %v1988
    %v1999 = vadd.f32 %v1997, %v1998
    %v2000 = vtanh.pop %v1999
    %v2001 = vmul.f32 %v1996, %v2000
    %v2002 = vmax.f32 %v2001, 0.0
    %s2003 = scalar_lea.vmem %s3, 1
    %v2004 = vld [vmem:[%s2003] ss:$2 sm:$0xf]
    %v2006 = vlaneseq
    %v2007 = vshrl.u32 %v2006, 7
    %v2008 = vsub.s32 0, %v2007
    %v2009 = vrot.slane %v2004, %v2008
    %2011 = vmatprep.subr.mxu0 %v104
    %2012 = vmatpush1.msra.mxu0 %v103
    %2013 = vmatprep.subr.mxu0 %v106
    %2014 = vmatpush1.msra.mxu0 %v105
    %2015 = vmatprep.subr.mxu0 %v108
    %2016 = vmatpush1.msra.mxu0 %v107
    %2017 = vmatprep.subr.mxu0 %v110
    %2018 = vmatpush1.msra.mxu0 %v109
    %2019 = vmatprep.subr.mxu0 %v112
    %2020 = vmatpush1.msra.mxu0 %v111
    %2021 = vmatprep.subr.mxu0 %v114
    %2022 = vmatpush1.msra.mxu0 %v113
    %2023 = vmatprep.subr.mxu0 %v116
    %2024 = vmatpush1.msra.mxu0 %v115
    %2025 = vmatprep.subr.mxu0 %v118
    %2026 = vmatpush1.msra.mxu0 %v117
    %2027 = vmatprep.subr.mxu0 %v120
    %2028 = vmatpush1.msra.mxu0 %v119
    %2029 = vmatprep.subr.mxu0 %v122
    %2030 = vmatpush1.msra.mxu0 %v121
    %2031 = vmatprep.subr.mxu0 %v124
    %2032 = vmatpush1.msra.mxu0 %v123
    %2033 = vmatprep.subr.mxu0 %v126
    %2034 = vmatpush1.msra.mxu0 %v125
    %2035 = vmatprep.subr.mxu0 %v128
    %2036 = vmatpush1.msra.mxu0 %v127
    %2037 = vmatprep.subr.mxu0 %v130
    %2038 = vmatpush1.msra.mxu0 %v129
    %2039 = vmatprep.subr.mxu0 %v132
    %2040 = vmatpush1.msra.mxu0 %v131
    %2041 = vmatprep.subr.mxu0 %v134
    %2042 = vmatpush1.msra.mxu0 %v133
    %2043 = vmatprep.subr.mxu0 0.0
    %2044 = vmatpush1.msra.mxu0 0.0
    %2045 = vmatprep.subr.mxu0 0.0
    %2046 = vmatpush1.msra.mxu0 0.0
    %2047 = vmatprep.subr.mxu0 0.0
    %2048 = vmatpush1.msra.mxu0 0.0
    %2049 = vmatprep.subr.mxu0 0.0
    %2050 = vmatpush1.msra.mxu0 0.0
    %2051 = vmatprep.subr.mxu0 0.0
    %2052 = vmatpush1.msra.mxu0 0.0
    %2053 = vmatprep.subr.mxu0 0.0
    %2054 = vmatpush1.msra.mxu0 0.0
    %2055 = vmatprep.subr.mxu0 0.0
    %2056 = vmatpush1.msra.mxu0 0.0
    %2057 = vmatprep.subr.mxu0 0.0
    %2058 = vmatpush1.msra.mxu0 0.0
    %2059 = vmatprep.subr.mxu0 0.0
    %2060 = vmatpush1.msra.mxu0 0.0
    %2061 = vmatprep.subr.mxu0 0.0
    %2062 = vmatpush1.msra.mxu0 0.0
    %2063 = vmatprep.subr.mxu0 0.0
    %2064 = vmatpush1.msra.mxu0 0.0
    %2065 = vmatprep.subr.mxu0 0.0
    %2066 = vmatpush1.msra.mxu0 0.0
    %2067 = vmatprep.subr.mxu0 0.0
    %2068 = vmatpush1.msra.mxu0 0.0
    %2069 = vmatprep.subr.mxu0 0.0
    %2070 = vmatpush1.msra.mxu0 0.0
    %2071 = vmatprep.subr.mxu0 0.0
    %2072 = vmatpush1.msra.mxu0 0.0
    %2073 = vmatprep.subr.mxu0 0.0
    %2074 = vmatpush1.msra.mxu0 0.0
    %2075 = vmatprep.mubr.f32.mxu0 0.0
    %2076 = vmatmul.mubr.f32.gmra.mrb[0].mxu0 %v2002
    %v2077 = vpop.f32.mrb[0].mxu0
    %v2078 = vadd.f32 %v2009, %v2077
    %v2079 = vpop.f32.mrb[0].mxu0
    %2080 = vdwg.mxu0
    %v2083 = vunpack.c.l.s4 1983009808
    %v2084 = vunpack.c.0.s8 %v2083
    %v2085 = vlaneseq
    %v2086 = vshrl.u32 %v2085, 7
    %v2087 = vsub.s32 %v2084, %v2086
    %v2088 = vrot.slane %v2001, %v2087
    %2089 = vrot.lane.b32.xlu0 %v2088, 16
    %v2090 = vpop.permute.xlu0 %2089
    %v2094 = vunpack.c.l.s4 1983009808
    %v2095 = vunpack.c.0.s8 %v2094
    %v2096 = vlaneseq
    %v2097 = vshrl.u32 %v2096, 7
    %v2098 = vsub.s32 %v2095, %v2097
    %v2099 = vrot.slane %v1999, %v2098
    %2100 = vrot.lane.b32.xlu0 %v2099, 48
    %v2101 = vpop.permute.xlu0 %2100
    %v2103 = vsel %vm159, %v2078, %v2090
    %vm2104 = vcmask 392192
    %v2105 = vsel %vm2104, %v2103, %v2101
    %vm2106 = vcmask 648192
    %2107 = vst.msk [vmem:[%s4] sm:$0x3] %vm2106, %v2105
    // Predicated region
    $region22: #{autoregressive_lstm_forward.1} parent=1 // pred_check
      _
    $region23: #{autoregressive_lstm_forward.1} parent=1 // pred_check_branch
      %2109 = sbr.rel (0) target = $region25
    $region24: #{autoregressive_lstm_forward.1} parent=1 // pred_region
      _
    $region25: #{autoregressive_lstm_forward.1} parent=1 // pred_fallthru
      _
    // Predicated region
    $region26: #{autoregressive_lstm_forward.1} parent=1 // pred_check
      _
    $region27: #{autoregressive_lstm_forward.1} parent=1 // pred_check_branch
      %2111 = sbr.rel (0) target = $region29
    $region28: #{autoregressive_lstm_forward.1} parent=1 // pred_region
      _
    $region29: #{autoregressive_lstm_forward.1} parent=1 // pred_fallthru
      _
    %2112 = vsyncpa [#allocation4], 1

</llo_original>
